<compile_context>
chip_gen: v5e
topology: v5e:2x2
jax: 0.10.0
libtpu: 0.0.40
codegen_flags: <defaults>
</compile_context>

<pallas_src>
import jax
import jax.numpy as jnp
from jax import lax
from jax.experimental import pallas as pl
from jax.experimental.pallas import tpu as pltpu

INPUT_SIZE = 5        # stroke token size (fixed by the module's initial token)
HIDDEN_SIZE = 32      # hyper_parameters.HIDDEN_SIZE
MAX_STROKES = 8       # hyper_parameters.MAX_STROKES
IN_PAD = 8            # input dim 5 padded to 8 sublanes for the W_ih layout
OUT_PAD = 8           # 7 head outputs padded to 8 sublanes
LANES = 128           # lane width of every tile in the kernel
GATES = 4 * HIDDEN_SIZE   # 128 == exactly one vreg width


def sketch_decoder_kernel(z_ref, w_ih_ref, b_gate_ref, w_lin_ref, b_lin_ref, out_ref):
    H = HIDDEN_SIZE

    # hoisted iotas / masks (JAX does not CSE broadcast_in_dim)
    sub = lax.broadcasted_iota(jnp.int32, (OUT_PAD, 1), 0)    # (8,1)
    lane = lax.broadcasted_iota(jnp.int32, (1, LANES), 1)     # (1,128)

    exp_scale = jnp.where((sub == 1) | (sub == 3), 0.5,
                          jnp.where((sub >= 4) & (sub <= 6), 1.0, 0.0))
    mu_mask = (sub == 0) | (sub == 2)
    pen_src = (sub >= 4) & (sub <= 6)      # softmax numerators in the head vector
    pen_dst = (sub >= 2) & (sub <= 4)      # pen-prob slots of the next token
    is0 = sub == 0
    is1 = sub == 1
    is4 = sub == 4

    # loop-invariant weight loads (stay resident in vregs across the unrolled loop)
    w_ih = w_ih_ref[...]     # (8,128)  sublane = input component, lane = gate [i|f|g|o]
    bg = b_gate_ref[...]     # (1,128)  b_ih + b_hh
    wl = w_lin_ref[...]      # (8,128)  sublane = head output, lanes [0,H) hidden, rest 0
    bl = b_lin_ref[...]      # (8,1)

    tok_init = jnp.where(sub == 2, 1.0, 0.0)              # [0,0,1,0,0,...] on sublanes
    pad_tok = jnp.where(sub == 4, 1.0, 0.0)                # [0,0,0,0,1,...]
    acc_init = jnp.where(lane == 0, tok_init, pad_tok)     # (8,128) component x stroke
    wmask_init = jnp.where(lane == 1, 1.0, 0.0)            # first append -> stroke row 1

    def step(i, carry):
        tok, stop_f, done_f, wmask, acc = carry

        # while-condition: checked on the previous token (output[-1]) before the cell
        done_f = jnp.maximum(done_f, stop_f)               # (1,1), stays in {0,1}

        z0 = z_ref[2 * i]
        z1 = z_ref[2 * i + 1]

        # ---- LSTMCell with h_prev = c_prev = 0: one VPU mul + one sublane reduce ----
        gates = bg + jnp.sum(tok * w_ih, axis=0, keepdims=True)          # (1, 4H)
        sg = jax.nn.sigmoid(gates)                 # i-gate at [0,H), o-gate at [3H,4H)
        tg = jnp.tanh(gates)                       # g-gate at [2H,3H)
        c_full = sg * pltpu.roll(tg, 2 * H, axis=1)            # i*g valid on lanes [0,H)
        h_full = pltpu.roll(sg, H, axis=1) * jnp.tanh(c_full)  # o*tanh(c), bounded junk >=H

        # ---- linear head + tanh: one lane reduce; junk lanes masked by wl zero-pad ----
        v = jnp.tanh(jnp.sum(h_full * wl, axis=-1, keepdims=True) + bl)  # (8,1)

        # one fused exp covers sigma_x, sigma_y and the pen-softmax numerators
        e = jnp.exp(v * exp_scale)
        comb = jnp.where(mu_mask, v, e)      # [mu_x, sig_x, mu_y, sig_y, n0, n1, n2, 1]
        denom = jnp.sum(jnp.where(pen_src, comb, 0.0), axis=0, keepdims=True)   # (1,1)
        inv = pl.reciprocal(denom, approx=True)

        # next token built in the sublane domain: 2 rolls + masked FMAs, no extracts
        r1 = pltpu.roll(comb, 7, axis=0)     # r1[k] = comb[k+1]
        r2 = pltpu.roll(comb, 6, axis=0)     # r2[k] = comb[k+2]
        gauss = (jnp.where(is0, comb + r1 * z0, 0.0)          # mu_x + sigma_x*z0 @ sub 0
                 + jnp.where(is1, r1 + r2 * z1, 0.0))         # mu_y + sigma_y*z1 @ sub 1
        pen = jnp.where(pen_dst, r2 * inv, 0.0)               # softmax probs @ sub 2..4
        tok_next = gauss + pen               # [gx, gy, p0, p1, p2, 0, 0, 0]

        # stop flag for the NEXT iteration, evaluated on tok_next:
        # argmax(p)==2 <=> p2>p0 & p2>p1 <=> n2>n0 & n2>n1 (exp monotone, denom>0);
        # reuses r1/r2 at sublane 4, no extra rolls.
        stop_next = jnp.sum(
            jnp.where(is4, ((r2 > comb) & (r2 > r1)).astype(jnp.float32), 0.0),
            axis=0, keepdims=True)            # (1,1)

        # append gating — entirely in vregs, fully branchless
        append_f = (1.0 - done_f) * (i > 0).astype(jnp.float32)          # (1,1) in {0,1}

        write = (append_f > 0.0) & (wmask > 0.5)                         # (1,128)
        acc = jnp.where(write, tok_next, acc)                            # (8,128)

        wmask = wmask + append_f * (pltpu.roll(wmask, 1, axis=1) - wmask)
        tok = tok + append_f * (tok_next - tok)
        stop_f = stop_f + append_f * (stop_next - stop_f)
        return (tok, stop_f, done_f, wmask, acc)

    init = (tok_init,
            jnp.zeros((1, 1), jnp.float32),   # stop flag of the carried token
            jnp.zeros((1, 1), jnp.float32),   # done flag
            wmask_init,
            acc_init)
    final = lax.fori_loop(0, MAX_STROKES, step, init, unroll=True)

    out_ref[...] = final[4]                   # single unmasked (8,128) store


def sketch_decoder_forward(z, w_ihT, b_gate, w_linS, b_linS):
    out = pl.pallas_call(
        sketch_decoder_kernel,
        out_shape=jax.ShapeDtypeStruct((OUT_PAD, LANES), jnp.float32),
        in_specs=[
            pl.BlockSpec(memory_space=pltpu.MemorySpace.SMEM),   # z flat (2*MAX_STROKES,)
            pl.BlockSpec(memory_space=pltpu.MemorySpace.VMEM),   # W_ih^T padded (8, 4H)
            pl.BlockSpec(memory_space=pltpu.MemorySpace.VMEM),   # b_ih + b_hh   (1, 4H)
            pl.BlockSpec(memory_space=pltpu.MemorySpace.VMEM),   # W_lin padded  (8, 128)
            pl.BlockSpec(memory_space=pltpu.MemorySpace.VMEM),   # b_lin         (8, 1)
        ],
        out_specs=pl.BlockSpec(memory_space=pltpu.MemorySpace.VMEM),
    )(z.reshape(-1), w_ihT, b_gate, w_linS, b_linS)
    # kernel output is (component, stroke); transpose/slice here is layout plumbing only
    return out[:INPUT_SIZE, :MAX_STROKES].T


def make_params(key):
    """Deterministic synthetic params with PyTorch-default-style U(-1/sqrt(H), 1/sqrt(H))."""
    k1, k2, k3, k4, k5, k6 = jax.random.split(key, 6)
    bound = 1.0 / jnp.sqrt(jnp.float32(HIDDEN_SIZE))
    w_ih = jax.random.uniform(k1, (GATES, INPUT_SIZE), jnp.float32, -bound, bound)
    b_ih = jax.random.uniform(k2, (GATES,), jnp.float32, -bound, bound)
    # weight_hh is multiplied by an always-zero hidden state, so only b_hh survives.
    b_hh = jax.random.uniform(k3, (GATES,), jnp.float32, -bound, bound)
    w_lin = jax.random.uniform(k4, (7, HIDDEN_SIZE), jnp.float32, -bound, bound)
    b_lin = jax.random.uniform(k5, (7,), jnp.float32, -bound, bound)

    # Kernel layouts.
    w_ihT = jnp.zeros((IN_PAD, GATES), jnp.float32).at[:INPUT_SIZE, :].set(w_ih.T)
    b_gate = (b_ih + b_hh).reshape(1, GATES)
    # head weights padded to 128 lanes so junk lanes of h are masked by the lane reduce
    w_linS = jnp.zeros((OUT_PAD, LANES), jnp.float32).at[:7, :HIDDEN_SIZE].set(w_lin)
    b_linS = jnp.zeros((OUT_PAD, 1), jnp.float32).at[:7, 0].set(b_lin)

    # Std-normal draws for torch.normal(mu, sigma); mu + sigma*z happens in-kernel.
    z = jax.random.normal(k6, (MAX_STROKES, 2), jnp.float32)
    return z, w_ihT, b_gate, w_linS, b_linS


if __name__ == "__main__":
    key = jax.random.PRNGKey(0)
    params = make_params(key)

    out = jax.jit(sketch_decoder_forward)(*params)
    out = jax.block_until_ready(out)

    assert out.shape == (MAX_STROKES, INPUT_SIZE) and out.dtype == jnp.float32
    assert bool(jnp.all(jnp.isfinite(out)))
    # row 0 must be the initial token [0,0,1,0,0]
    assert bool(jnp.allclose(out[0], jnp.array([0, 0, 1, 0, 0], jnp.float32)))
    print("KERNEL_OK")
</pallas_src>

<mosaic_0001>
module attributes {stable_mosaic.version = 11 : i64} {
  func.func @sketch_decoder_kernel(%arg0: memref<16xf32, #tpu.memory_space<smem>>, %arg1: memref<8x128xf32, #tpu.memory_space<vmem>>, %arg2: memref<1x128xf32, #tpu.memory_space<vmem>>, %arg3: memref<8x128xf32, #tpu.memory_space<vmem>>, %arg4: memref<8x1xf32, #tpu.memory_space<vmem>>, %arg5: memref<8x128xf32, #tpu.memory_space<vmem>>) attributes {dimension_semantics = [], scalar_prefetch = 0 : i64, scratch_operands = 0 : i64, tpu.core_type = #tpu.core_type<tc>} {
    %0 = tpu.iota {dimensions = array<i32: 0>} : vector<8x1xi32>
    %1 = tpu.iota {dimensions = array<i32: 1>} : vector<1x128xi32>
    %c1_i32 = arith.constant 1 : i32
    %2 = vector.broadcast %c1_i32 : i32 to vector<8x1xi32>
    %3 = arith.cmpi eq, %0, %2 : vector<8x1xi32>
    %c3_i32 = arith.constant 3 : i32
    %4 = vector.broadcast %c3_i32 : i32 to vector<8x1xi32>
    %5 = arith.cmpi eq, %0, %4 : vector<8x1xi32>
    %6 = arith.ori %3, %5 : vector<8x1xi1>
    %c4_i32 = arith.constant 4 : i32
    %7 = vector.broadcast %c4_i32 : i32 to vector<8x1xi32>
    %8 = arith.cmpi sge, %0, %7 : vector<8x1xi32>
    %c6_i32 = arith.constant 6 : i32
    %9 = vector.broadcast %c6_i32 : i32 to vector<8x1xi32>
    %10 = arith.cmpi sle, %0, %9 : vector<8x1xi32>
    %11 = arith.andi %8, %10 : vector<8x1xi1>
    %cst = arith.constant 1.000000e+00 : f32
    %cst_0 = arith.constant 0.000000e+00 : f32
    %12 = vector.broadcast %cst : f32 to vector<8x1xf32>
    %13 = vector.broadcast %cst_0 : f32 to vector<8x1xf32>
    %14 = arith.select %11, %12, %13 : vector<8x1xi1>, vector<8x1xf32>
    %cst_1 = arith.constant 5.000000e-01 : f32
    %15 = vector.broadcast %cst_1 : f32 to vector<8x1xf32>
    %16 = arith.select %6, %15, %14 : vector<8x1xi1>, vector<8x1xf32>
    %c0_i32 = arith.constant 0 : i32
    %17 = vector.broadcast %c0_i32 : i32 to vector<8x1xi32>
    %18 = arith.cmpi eq, %0, %17 : vector<8x1xi32>
    %c2_i32 = arith.constant 2 : i32
    %19 = vector.broadcast %c2_i32 : i32 to vector<8x1xi32>
    %20 = arith.cmpi eq, %0, %19 : vector<8x1xi32>
    %21 = arith.ori %18, %20 : vector<8x1xi1>
    %c4_i32_2 = arith.constant 4 : i32
    %22 = vector.broadcast %c4_i32_2 : i32 to vector<8x1xi32>
    %23 = arith.cmpi sge, %0, %22 : vector<8x1xi32>
    %c6_i32_3 = arith.constant 6 : i32
    %24 = vector.broadcast %c6_i32_3 : i32 to vector<8x1xi32>
    %25 = arith.cmpi sle, %0, %24 : vector<8x1xi32>
    %26 = arith.andi %23, %25 : vector<8x1xi1>
    %c2_i32_4 = arith.constant 2 : i32
    %27 = vector.broadcast %c2_i32_4 : i32 to vector<8x1xi32>
    %28 = arith.cmpi sge, %0, %27 : vector<8x1xi32>
    %c4_i32_5 = arith.constant 4 : i32
    %29 = vector.broadcast %c4_i32_5 : i32 to vector<8x1xi32>
    %30 = arith.cmpi sle, %0, %29 : vector<8x1xi32>
    %31 = arith.andi %28, %30 : vector<8x1xi1>
    %c0_i32_6 = arith.constant 0 : i32
    %32 = vector.broadcast %c0_i32_6 : i32 to vector<8x1xi32>
    %33 = arith.cmpi eq, %0, %32 : vector<8x1xi32>
    %c1_i32_7 = arith.constant 1 : i32
    %34 = vector.broadcast %c1_i32_7 : i32 to vector<8x1xi32>
    %35 = arith.cmpi eq, %0, %34 : vector<8x1xi32>
    %c4_i32_8 = arith.constant 4 : i32
    %36 = vector.broadcast %c4_i32_8 : i32 to vector<8x1xi32>
    %37 = arith.cmpi eq, %0, %36 : vector<8x1xi32>
    %c0 = arith.constant 0 : index
    %c0_9 = arith.constant 0 : index
    %38 = vector.load %arg1[%c0, %c0_9] : memref<8x128xf32, #tpu.memory_space<vmem>>, vector<8x128xf32>
    %c0_10 = arith.constant 0 : index
    %c0_11 = arith.constant 0 : index
    %39 = vector.load %arg2[%c0_10, %c0_11] : memref<1x128xf32, #tpu.memory_space<vmem>>, vector<1x128xf32>
    %c0_12 = arith.constant 0 : index
    %c0_13 = arith.constant 0 : index
    %40 = vector.load %arg3[%c0_12, %c0_13] : memref<8x128xf32, #tpu.memory_space<vmem>>, vector<8x128xf32>
    %c0_14 = arith.constant 0 : index
    %c0_15 = arith.constant 0 : index
    %41 = vector.load %arg4[%c0_14, %c0_15] : memref<8x1xf32, #tpu.memory_space<vmem>>, vector<8x1xf32>
    %c2_i32_16 = arith.constant 2 : i32
    %42 = vector.broadcast %c2_i32_16 : i32 to vector<8x1xi32>
    %43 = arith.cmpi eq, %0, %42 : vector<8x1xi32>
    %cst_17 = arith.constant 1.000000e+00 : f32
    %cst_18 = arith.constant 0.000000e+00 : f32
    %44 = vector.broadcast %cst_17 : f32 to vector<8x1xf32>
    %45 = vector.broadcast %cst_18 : f32 to vector<8x1xf32>
    %46 = arith.select %43, %44, %45 : vector<8x1xi1>, vector<8x1xf32>
    %c4_i32_19 = arith.constant 4 : i32
    %47 = vector.broadcast %c4_i32_19 : i32 to vector<8x1xi32>
    %48 = arith.cmpi eq, %0, %47 : vector<8x1xi32>
    %cst_20 = arith.constant 1.000000e+00 : f32
    %cst_21 = arith.constant 0.000000e+00 : f32
    %49 = vector.broadcast %cst_20 : f32 to vector<8x1xf32>
    %50 = vector.broadcast %cst_21 : f32 to vector<8x1xf32>
    %51 = arith.select %48, %49, %50 : vector<8x1xi1>, vector<8x1xf32>
    %c0_i32_22 = arith.constant 0 : i32
    %52 = vector.broadcast %c0_i32_22 : i32 to vector<1x128xi32>
    %53 = arith.cmpi eq, %1, %52 : vector<1x128xi32>
    %54 = vector.shape_cast %53 : vector<1x128xi1> to vector<1x128xi1>
    %55 = vector.broadcast %54 : vector<1x128xi1> to vector<8x128xi1>
    %56 = vector.shape_cast %46 : vector<8x1xf32> to vector<8x1xf32>
    %57 = vector.broadcast %56 : vector<8x1xf32> to vector<8x128xf32>
    %58 = vector.shape_cast %51 : vector<8x1xf32> to vector<8x1xf32>
    %59 = vector.broadcast %58 : vector<8x1xf32> to vector<8x128xf32>
    %60 = arith.select %55, %57, %59 : vector<8x128xi1>, vector<8x128xf32>
    %c1_i32_23 = arith.constant 1 : i32
    %61 = vector.broadcast %c1_i32_23 : i32 to vector<1x128xi32>
    %62 = arith.cmpi eq, %1, %61 : vector<1x128xi32>
    %cst_24 = arith.constant 1.000000e+00 : f32
    %cst_25 = arith.constant 0.000000e+00 : f32
    %63 = vector.broadcast %cst_24 : f32 to vector<1x128xf32>
    %64 = vector.broadcast %cst_25 : f32 to vector<1x128xf32>
    %65 = arith.select %62, %63, %64 : vector<1x128xi1>, vector<1x128xf32>
    %cst_26 = arith.constant 0.000000e+00 : f32
    %66 = vector.broadcast %cst_26 : f32 to vector<1x1xf32>
    %cst_27 = arith.constant 0.000000e+00 : f32
    %67 = vector.broadcast %cst_27 : f32 to vector<1x1xf32>
    %c0_i32_28 = arith.constant 0 : i32
    %68 = arith.maximumf %67, %66 : vector<1x1xf32>
    %c2_i32_29 = arith.constant 2 : i32
    %69 = arith.muli %c2_i32_29, %c0_i32_28 : i32
    %70 = arith.index_cast %69 : i32 to index
    %71 = memref.load %arg0[%70] : memref<16xf32, #tpu.memory_space<smem>>
    %c2_i32_30 = arith.constant 2 : i32
    %72 = arith.muli %c2_i32_30, %c0_i32_28 : i32
    %c1_i32_31 = arith.constant 1 : i32
    %73 = arith.addi %72, %c1_i32_31 : i32
    %74 = arith.index_cast %73 : i32 to index
    %75 = memref.load %arg0[%74] : memref<16xf32, #tpu.memory_space<smem>>
    %76 = vector.broadcast %46 : vector<8x1xf32> to vector<8x128xf32>
    %77 = arith.mulf %76, %38 : vector<8x128xf32>
    %cst_32 = arith.constant dense<0.000000e+00> : vector<128xf32>
    %78 = vector.multi_reduction <add>, %77, %cst_32 [0] : vector<8x128xf32> to vector<128xf32>
    %79 = vector.shape_cast %78 : vector<128xf32> to vector<1x128xf32>
    %80 = arith.addf %39, %79 : vector<1x128xf32>
    %81 = arith.negf %80 : vector<1x128xf32>
    %82 = math.exp %81 : vector<1x128xf32>
    %cst_33 = arith.constant 1.000000e+00 : f32
    %83 = vector.broadcast %cst_33 : f32 to vector<1x128xf32>
    %84 = arith.addf %83, %82 : vector<1x128xf32>
    %85 = arith.divf %83, %84 : vector<1x128xf32>
    %86 = math.tanh %80 : vector<1x128xf32>
    %c64_i32 = arith.constant 64 : i32
    %87 = tpu.dynamic_rotate %86 by %c64_i32 dim 1 : vector<1x128xf32>, i32 -> vector<1x128xf32>
    %88 = arith.mulf %85, %87 : vector<1x128xf32>
    %c32_i32 = arith.constant 32 : i32
    %89 = tpu.dynamic_rotate %85 by %c32_i32 dim 1 : vector<1x128xf32>, i32 -> vector<1x128xf32>
    %90 = math.tanh %88 : vector<1x128xf32>
    %91 = arith.mulf %89, %90 : vector<1x128xf32>
    %92 = vector.broadcast %91 : vector<1x128xf32> to vector<8x128xf32>
    %93 = arith.mulf %92, %40 : vector<8x128xf32>
    %cst_34 = arith.constant dense<0.000000e+00> : vector<8xf32>
    %94 = vector.multi_reduction <add>, %93, %cst_34 [1] : vector<8x128xf32> to vector<8xf32>
    %95 = vector.shape_cast %94 : vector<8xf32> to vector<8x1xf32>
    %96 = arith.addf %95, %41 : vector<8x1xf32>
    %97 = math.tanh %96 : vector<8x1xf32>
    %98 = arith.mulf %97, %16 : vector<8x1xf32>
    %99 = math.exp %98 : vector<8x1xf32>
    %100 = arith.select %21, %97, %99 : vector<8x1xi1>, vector<8x1xf32>
    %cst_35 = arith.constant 0.000000e+00 : f32
    %101 = vector.broadcast %cst_35 : f32 to vector<8x1xf32>
    %102 = arith.select %26, %100, %101 : vector<8x1xi1>, vector<8x1xf32>
    %cst_36 = arith.constant dense<0.000000e+00> : vector<1xf32>
    %103 = vector.multi_reduction <add>, %102, %cst_36 [0] : vector<8x1xf32> to vector<1xf32>
    %104 = vector.shape_cast %103 : vector<1xf32> to vector<1x1xf32>
    %105 = tpu.reciprocal %104 {approx = true} : vector<1x1xf32> -> vector<1x1xf32>
    %c7_i32 = arith.constant 7 : i32
    %106 = tpu.dynamic_rotate %100 by %c7_i32 dim 0 : vector<8x1xf32>, i32 -> vector<8x1xf32>
    %c6_i32_37 = arith.constant 6 : i32
    %107 = tpu.dynamic_rotate %100 by %c6_i32_37 dim 0 : vector<8x1xf32>, i32 -> vector<8x1xf32>
    %108 = vector.broadcast %71 : f32 to vector<8x1xf32>
    %109 = arith.mulf %106, %108 : vector<8x1xf32>
    %110 = arith.addf %100, %109 : vector<8x1xf32>
    %cst_38 = arith.constant 0.000000e+00 : f32
    %111 = vector.broadcast %cst_38 : f32 to vector<8x1xf32>
    %112 = arith.select %33, %110, %111 : vector<8x1xi1>, vector<8x1xf32>
    %113 = vector.broadcast %75 : f32 to vector<8x1xf32>
    %114 = arith.mulf %107, %113 : vector<8x1xf32>
    %115 = arith.addf %106, %114 : vector<8x1xf32>
    %cst_39 = arith.constant 0.000000e+00 : f32
    %116 = vector.broadcast %cst_39 : f32 to vector<8x1xf32>
    %117 = arith.select %35, %115, %116 : vector<8x1xi1>, vector<8x1xf32>
    %118 = arith.addf %112, %117 : vector<8x1xf32>
    %119 = vector.broadcast %105 : vector<1x1xf32> to vector<8x1xf32>
    %120 = arith.mulf %107, %119 : vector<8x1xf32>
    %cst_40 = arith.constant 0.000000e+00 : f32
    %121 = vector.broadcast %cst_40 : f32 to vector<8x1xf32>
    %122 = arith.select %31, %120, %121 : vector<8x1xi1>, vector<8x1xf32>
    %123 = arith.addf %118, %122 : vector<8x1xf32>
    %124 = arith.cmpf ogt, %107, %100 : vector<8x1xf32>
    %125 = arith.cmpf ogt, %107, %106 : vector<8x1xf32>
    %126 = arith.andi %124, %125 : vector<8x1xi1>
    %127 = arith.extui %126 : vector<8x1xi1> to vector<8x1xi32>
    %128 = arith.sitofp %127 : vector<8x1xi32> to vector<8x1xf32>
    %cst_41 = arith.constant 0.000000e+00 : f32
    %129 = vector.broadcast %cst_41 : f32 to vector<8x1xf32>
    %130 = arith.select %37, %128, %129 : vector<8x1xi1>, vector<8x1xf32>
    %cst_42 = arith.constant dense<0.000000e+00> : vector<1xf32>
    %131 = vector.multi_reduction <add>, %130, %cst_42 [0] : vector<8x1xf32> to vector<1xf32>
    %132 = vector.shape_cast %131 : vector<1xf32> to vector<1x1xf32>
    %cst_43 = arith.constant 1.000000e+00 : f32
    %133 = vector.broadcast %cst_43 : f32 to vector<1x1xf32>
    %134 = arith.subf %133, %68 : vector<1x1xf32>
    %c0_i32_44 = arith.constant 0 : i32
    %135 = arith.cmpi sgt, %c0_i32_28, %c0_i32_44 : i32
    %136 = arith.extui %135 : i1 to i32
    %137 = arith.sitofp %136 : i32 to f32
    %138 = vector.broadcast %137 : f32 to vector<1x1xf32>
    %139 = arith.mulf %134, %138 : vector<1x1xf32>
    %cst_45 = arith.constant 0.000000e+00 : f32
    %140 = vector.broadcast %cst_45 : f32 to vector<1x1xf32>
    %141 = arith.cmpf ogt, %139, %140 : vector<1x1xf32>
    %cst_46 = arith.constant 5.000000e-01 : f32
    %142 = vector.broadcast %cst_46 : f32 to vector<1x128xf32>
    %143 = arith.cmpf ogt, %65, %142 : vector<1x128xf32>
    %144 = vector.broadcast %141 : vector<1x1xi1> to vector<1x128xi1>
    %145 = arith.andi %144, %143 : vector<1x128xi1>
    %146 = vector.shape_cast %145 : vector<1x128xi1> to vector<1x128xi1>
    %147 = vector.broadcast %146 : vector<1x128xi1> to vector<8x128xi1>
    %148 = vector.shape_cast %123 : vector<8x1xf32> to vector<8x1xf32>
    %149 = vector.broadcast %148 : vector<8x1xf32> to vector<8x128xf32>
    %150 = arith.select %147, %149, %60 : vector<8x128xi1>, vector<8x128xf32>
    %c1_i32_47 = arith.constant 1 : i32
    %151 = tpu.dynamic_rotate %65 by %c1_i32_47 dim 1 : vector<1x128xf32>, i32 -> vector<1x128xf32>
    %152 = arith.subf %151, %65 : vector<1x128xf32>
    %153 = vector.broadcast %139 : vector<1x1xf32> to vector<1x128xf32>
    %154 = arith.mulf %153, %152 : vector<1x128xf32>
    %155 = arith.addf %65, %154 : vector<1x128xf32>
    %156 = arith.subf %123, %46 : vector<8x1xf32>
    %157 = vector.broadcast %139 : vector<1x1xf32> to vector<8x1xf32>
    %158 = arith.mulf %157, %156 : vector<8x1xf32>
    %159 = arith.addf %46, %158 : vector<8x1xf32>
    %160 = arith.subf %132, %66 : vector<1x1xf32>
    %161 = arith.mulf %139, %160 : vector<1x1xf32>
    %162 = arith.addf %66, %161 : vector<1x1xf32>
    %c1_i32_48 = arith.constant 1 : i32
    %163 = arith.maximumf %68, %162 : vector<1x1xf32>
    %c2_i32_49 = arith.constant 2 : i32
    %164 = arith.muli %c2_i32_49, %c1_i32_48 : i32
    %165 = arith.index_cast %164 : i32 to index
    %166 = memref.load %arg0[%165] : memref<16xf32, #tpu.memory_space<smem>>
    %c2_i32_50 = arith.constant 2 : i32
    %167 = arith.muli %c2_i32_50, %c1_i32_48 : i32
    %c1_i32_51 = arith.constant 1 : i32
    %168 = arith.addi %167, %c1_i32_51 : i32
    %169 = arith.index_cast %168 : i32 to index
    %170 = memref.load %arg0[%169] : memref<16xf32, #tpu.memory_space<smem>>
    %171 = vector.broadcast %159 : vector<8x1xf32> to vector<8x128xf32>
    %172 = arith.mulf %171, %38 : vector<8x128xf32>
    %cst_52 = arith.constant dense<0.000000e+00> : vector<128xf32>
    %173 = vector.multi_reduction <add>, %172, %cst_52 [0] : vector<8x128xf32> to vector<128xf32>
    %174 = vector.shape_cast %173 : vector<128xf32> to vector<1x128xf32>
    %175 = arith.addf %39, %174 : vector<1x128xf32>
    %176 = arith.negf %175 : vector<1x128xf32>
    %177 = math.exp %176 : vector<1x128xf32>
    %cst_53 = arith.constant 1.000000e+00 : f32
    %178 = vector.broadcast %cst_53 : f32 to vector<1x128xf32>
    %179 = arith.addf %178, %177 : vector<1x128xf32>
    %180 = arith.divf %178, %179 : vector<1x128xf32>
    %181 = math.tanh %175 : vector<1x128xf32>
    %c64_i32_54 = arith.constant 64 : i32
    %182 = tpu.dynamic_rotate %181 by %c64_i32_54 dim 1 : vector<1x128xf32>, i32 -> vector<1x128xf32>
    %183 = arith.mulf %180, %182 : vector<1x128xf32>
    %c32_i32_55 = arith.constant 32 : i32
    %184 = tpu.dynamic_rotate %180 by %c32_i32_55 dim 1 : vector<1x128xf32>, i32 -> vector<1x128xf32>
    %185 = math.tanh %183 : vector<1x128xf32>
    %186 = arith.mulf %184, %185 : vector<1x128xf32>
    %187 = vector.broadcast %186 : vector<1x128xf32> to vector<8x128xf32>
    %188 = arith.mulf %187, %40 : vector<8x128xf32>
    %cst_56 = arith.constant dense<0.000000e+00> : vector<8xf32>
    %189 = vector.multi_reduction <add>, %188, %cst_56 [1] : vector<8x128xf32> to vector<8xf32>
    %190 = vector.shape_cast %189 : vector<8xf32> to vector<8x1xf32>
    %191 = arith.addf %190, %41 : vector<8x1xf32>
    %192 = math.tanh %191 : vector<8x1xf32>
    %193 = arith.mulf %192, %16 : vector<8x1xf32>
    %194 = math.exp %193 : vector<8x1xf32>
    %195 = arith.select %21, %192, %194 : vector<8x1xi1>, vector<8x1xf32>
    %cst_57 = arith.constant 0.000000e+00 : f32
    %196 = vector.broadcast %cst_57 : f32 to vector<8x1xf32>
    %197 = arith.select %26, %195, %196 : vector<8x1xi1>, vector<8x1xf32>
    %cst_58 = arith.constant dense<0.000000e+00> : vector<1xf32>
    %198 = vector.multi_reduction <add>, %197, %cst_58 [0] : vector<8x1xf32> to vector<1xf32>
    %199 = vector.shape_cast %198 : vector<1xf32> to vector<1x1xf32>
    %200 = tpu.reciprocal %199 {approx = true} : vector<1x1xf32> -> vector<1x1xf32>
    %c7_i32_59 = arith.constant 7 : i32
    %201 = tpu.dynamic_rotate %195 by %c7_i32_59 dim 0 : vector<8x1xf32>, i32 -> vector<8x1xf32>
    %c6_i32_60 = arith.constant 6 : i32
    %202 = tpu.dynamic_rotate %195 by %c6_i32_60 dim 0 : vector<8x1xf32>, i32 -> vector<8x1xf32>
    %203 = vector.broadcast %166 : f32 to vector<8x1xf32>
    %204 = arith.mulf %201, %203 : vector<8x1xf32>
    %205 = arith.addf %195, %204 : vector<8x1xf32>
    %cst_61 = arith.constant 0.000000e+00 : f32
    %206 = vector.broadcast %cst_61 : f32 to vector<8x1xf32>
    %207 = arith.select %33, %205, %206 : vector<8x1xi1>, vector<8x1xf32>
    %208 = vector.broadcast %170 : f32 to vector<8x1xf32>
    %209 = arith.mulf %202, %208 : vector<8x1xf32>
    %210 = arith.addf %201, %209 : vector<8x1xf32>
    %cst_62 = arith.constant 0.000000e+00 : f32
    %211 = vector.broadcast %cst_62 : f32 to vector<8x1xf32>
    %212 = arith.select %35, %210, %211 : vector<8x1xi1>, vector<8x1xf32>
    %213 = arith.addf %207, %212 : vector<8x1xf32>
    %214 = vector.broadcast %200 : vector<1x1xf32> to vector<8x1xf32>
    %215 = arith.mulf %202, %214 : vector<8x1xf32>
    %cst_63 = arith.constant 0.000000e+00 : f32
    %216 = vector.broadcast %cst_63 : f32 to vector<8x1xf32>
    %217 = arith.select %31, %215, %216 : vector<8x1xi1>, vector<8x1xf32>
    %218 = arith.addf %213, %217 : vector<8x1xf32>
    %219 = arith.cmpf ogt, %202, %195 : vector<8x1xf32>
    %220 = arith.cmpf ogt, %202, %201 : vector<8x1xf32>
    %221 = arith.andi %219, %220 : vector<8x1xi1>
    %222 = arith.extui %221 : vector<8x1xi1> to vector<8x1xi32>
    %223 = arith.sitofp %222 : vector<8x1xi32> to vector<8x1xf32>
    %cst_64 = arith.constant 0.000000e+00 : f32
    %224 = vector.broadcast %cst_64 : f32 to vector<8x1xf32>
    %225 = arith.select %37, %223, %224 : vector<8x1xi1>, vector<8x1xf32>
    %cst_65 = arith.constant dense<0.000000e+00> : vector<1xf32>
    %226 = vector.multi_reduction <add>, %225, %cst_65 [0] : vector<8x1xf32> to vector<1xf32>
    %227 = vector.shape_cast %226 : vector<1xf32> to vector<1x1xf32>
    %cst_66 = arith.constant 1.000000e+00 : f32
    %228 = vector.broadcast %cst_66 : f32 to vector<1x1xf32>
    %229 = arith.subf %228, %163 : vector<1x1xf32>
    %c0_i32_67 = arith.constant 0 : i32
    %230 = arith.cmpi sgt, %c1_i32_48, %c0_i32_67 : i32
    %231 = arith.extui %230 : i1 to i32
    %232 = arith.sitofp %231 : i32 to f32
    %233 = vector.broadcast %232 : f32 to vector<1x1xf32>
    %234 = arith.mulf %229, %233 : vector<1x1xf32>
    %cst_68 = arith.constant 0.000000e+00 : f32
    %235 = vector.broadcast %cst_68 : f32 to vector<1x1xf32>
    %236 = arith.cmpf ogt, %234, %235 : vector<1x1xf32>
    %cst_69 = arith.constant 5.000000e-01 : f32
    %237 = vector.broadcast %cst_69 : f32 to vector<1x128xf32>
    %238 = arith.cmpf ogt, %155, %237 : vector<1x128xf32>
    %239 = vector.broadcast %236 : vector<1x1xi1> to vector<1x128xi1>
    %240 = arith.andi %239, %238 : vector<1x128xi1>
    %241 = vector.shape_cast %240 : vector<1x128xi1> to vector<1x128xi1>
    %242 = vector.broadcast %241 : vector<1x128xi1> to vector<8x128xi1>
    %243 = vector.shape_cast %218 : vector<8x1xf32> to vector<8x1xf32>
    %244 = vector.broadcast %243 : vector<8x1xf32> to vector<8x128xf32>
    %245 = arith.select %242, %244, %150 : vector<8x128xi1>, vector<8x128xf32>
    %c1_i32_70 = arith.constant 1 : i32
    %246 = tpu.dynamic_rotate %155 by %c1_i32_70 dim 1 : vector<1x128xf32>, i32 -> vector<1x128xf32>
    %247 = arith.subf %246, %155 : vector<1x128xf32>
    %248 = vector.broadcast %234 : vector<1x1xf32> to vector<1x128xf32>
    %249 = arith.mulf %248, %247 : vector<1x128xf32>
    %250 = arith.addf %155, %249 : vector<1x128xf32>
    %251 = arith.subf %218, %159 : vector<8x1xf32>
    %252 = vector.broadcast %234 : vector<1x1xf32> to vector<8x1xf32>
    %253 = arith.mulf %252, %251 : vector<8x1xf32>
    %254 = arith.addf %159, %253 : vector<8x1xf32>
    %255 = arith.subf %227, %162 : vector<1x1xf32>
    %256 = arith.mulf %234, %255 : vector<1x1xf32>
    %257 = arith.addf %162, %256 : vector<1x1xf32>
    %c2_i32_71 = arith.constant 2 : i32
    %258 = arith.maximumf %163, %257 : vector<1x1xf32>
    %c2_i32_72 = arith.constant 2 : i32
    %259 = arith.muli %c2_i32_72, %c2_i32_71 : i32
    %260 = arith.index_cast %259 : i32 to index
    %261 = memref.load %arg0[%260] : memref<16xf32, #tpu.memory_space<smem>>
    %c2_i32_73 = arith.constant 2 : i32
    %262 = arith.muli %c2_i32_73, %c2_i32_71 : i32
    %c1_i32_74 = arith.constant 1 : i32
    %263 = arith.addi %262, %c1_i32_74 : i32
    %264 = arith.index_cast %263 : i32 to index
    %265 = memref.load %arg0[%264] : memref<16xf32, #tpu.memory_space<smem>>
    %266 = vector.broadcast %254 : vector<8x1xf32> to vector<8x128xf32>
    %267 = arith.mulf %266, %38 : vector<8x128xf32>
    %cst_75 = arith.constant dense<0.000000e+00> : vector<128xf32>
    %268 = vector.multi_reduction <add>, %267, %cst_75 [0] : vector<8x128xf32> to vector<128xf32>
    %269 = vector.shape_cast %268 : vector<128xf32> to vector<1x128xf32>
    %270 = arith.addf %39, %269 : vector<1x128xf32>
    %271 = arith.negf %270 : vector<1x128xf32>
    %272 = math.exp %271 : vector<1x128xf32>
    %cst_76 = arith.constant 1.000000e+00 : f32
    %273 = vector.broadcast %cst_76 : f32 to vector<1x128xf32>
    %274 = arith.addf %273, %272 : vector<1x128xf32>
    %275 = arith.divf %273, %274 : vector<1x128xf32>
    %276 = math.tanh %270 : vector<1x128xf32>
    %c64_i32_77 = arith.constant 64 : i32
    %277 = tpu.dynamic_rotate %276 by %c64_i32_77 dim 1 : vector<1x128xf32>, i32 -> vector<1x128xf32>
    %278 = arith.mulf %275, %277 : vector<1x128xf32>
    %c32_i32_78 = arith.constant 32 : i32
    %279 = tpu.dynamic_rotate %275 by %c32_i32_78 dim 1 : vector<1x128xf32>, i32 -> vector<1x128xf32>
    %280 = math.tanh %278 : vector<1x128xf32>
    %281 = arith.mulf %279, %280 : vector<1x128xf32>
    %282 = vector.broadcast %281 : vector<1x128xf32> to vector<8x128xf32>
    %283 = arith.mulf %282, %40 : vector<8x128xf32>
    %cst_79 = arith.constant dense<0.000000e+00> : vector<8xf32>
    %284 = vector.multi_reduction <add>, %283, %cst_79 [1] : vector<8x128xf32> to vector<8xf32>
    %285 = vector.shape_cast %284 : vector<8xf32> to vector<8x1xf32>
    %286 = arith.addf %285, %41 : vector<8x1xf32>
    %287 = math.tanh %286 : vector<8x1xf32>
    %288 = arith.mulf %287, %16 : vector<8x1xf32>
    %289 = math.exp %288 : vector<8x1xf32>
    %290 = arith.select %21, %287, %289 : vector<8x1xi1>, vector<8x1xf32>
    %cst_80 = arith.constant 0.000000e+00 : f32
    %291 = vector.broadcast %cst_80 : f32 to vector<8x1xf32>
    %292 = arith.select %26, %290, %291 : vector<8x1xi1>, vector<8x1xf32>
    %cst_81 = arith.constant dense<0.000000e+00> : vector<1xf32>
    %293 = vector.multi_reduction <add>, %292, %cst_81 [0] : vector<8x1xf32> to vector<1xf32>
    %294 = vector.shape_cast %293 : vector<1xf32> to vector<1x1xf32>
    %295 = tpu.reciprocal %294 {approx = true} : vector<1x1xf32> -> vector<1x1xf32>
    %c7_i32_82 = arith.constant 7 : i32
    %296 = tpu.dynamic_rotate %290 by %c7_i32_82 dim 0 : vector<8x1xf32>, i32 -> vector<8x1xf32>
    %c6_i32_83 = arith.constant 6 : i32
    %297 = tpu.dynamic_rotate %290 by %c6_i32_83 dim 0 : vector<8x1xf32>, i32 -> vector<8x1xf32>
    %298 = vector.broadcast %261 : f32 to vector<8x1xf32>
    %299 = arith.mulf %296, %298 : vector<8x1xf32>
    %300 = arith.addf %290, %299 : vector<8x1xf32>
    %cst_84 = arith.constant 0.000000e+00 : f32
    %301 = vector.broadcast %cst_84 : f32 to vector<8x1xf32>
    %302 = arith.select %33, %300, %301 : vector<8x1xi1>, vector<8x1xf32>
    %303 = vector.broadcast %265 : f32 to vector<8x1xf32>
    %304 = arith.mulf %297, %303 : vector<8x1xf32>
    %305 = arith.addf %296, %304 : vector<8x1xf32>
    %cst_85 = arith.constant 0.000000e+00 : f32
    %306 = vector.broadcast %cst_85 : f32 to vector<8x1xf32>
    %307 = arith.select %35, %305, %306 : vector<8x1xi1>, vector<8x1xf32>
    %308 = arith.addf %302, %307 : vector<8x1xf32>
    %309 = vector.broadcast %295 : vector<1x1xf32> to vector<8x1xf32>
    %310 = arith.mulf %297, %309 : vector<8x1xf32>
    %cst_86 = arith.constant 0.000000e+00 : f32
    %311 = vector.broadcast %cst_86 : f32 to vector<8x1xf32>
    %312 = arith.select %31, %310, %311 : vector<8x1xi1>, vector<8x1xf32>
    %313 = arith.addf %308, %312 : vector<8x1xf32>
    %314 = arith.cmpf ogt, %297, %290 : vector<8x1xf32>
    %315 = arith.cmpf ogt, %297, %296 : vector<8x1xf32>
    %316 = arith.andi %314, %315 : vector<8x1xi1>
    %317 = arith.extui %316 : vector<8x1xi1> to vector<8x1xi32>
    %318 = arith.sitofp %317 : vector<8x1xi32> to vector<8x1xf32>
    %cst_87 = arith.constant 0.000000e+00 : f32
    %319 = vector.broadcast %cst_87 : f32 to vector<8x1xf32>
    %320 = arith.select %37, %318, %319 : vector<8x1xi1>, vector<8x1xf32>
    %cst_88 = arith.constant dense<0.000000e+00> : vector<1xf32>
    %321 = vector.multi_reduction <add>, %320, %cst_88 [0] : vector<8x1xf32> to vector<1xf32>
    %322 = vector.shape_cast %321 : vector<1xf32> to vector<1x1xf32>
    %cst_89 = arith.constant 1.000000e+00 : f32
    %323 = vector.broadcast %cst_89 : f32 to vector<1x1xf32>
    %324 = arith.subf %323, %258 : vector<1x1xf32>
    %c0_i32_90 = arith.constant 0 : i32
    %325 = arith.cmpi sgt, %c2_i32_71, %c0_i32_90 : i32
    %326 = arith.extui %325 : i1 to i32
    %327 = arith.sitofp %326 : i32 to f32
    %328 = vector.broadcast %327 : f32 to vector<1x1xf32>
    %329 = arith.mulf %324, %328 : vector<1x1xf32>
    %cst_91 = arith.constant 0.000000e+00 : f32
    %330 = vector.broadcast %cst_91 : f32 to vector<1x1xf32>
    %331 = arith.cmpf ogt, %329, %330 : vector<1x1xf32>
    %cst_92 = arith.constant 5.000000e-01 : f32
    %332 = vector.broadcast %cst_92 : f32 to vector<1x128xf32>
    %333 = arith.cmpf ogt, %250, %332 : vector<1x128xf32>
    %334 = vector.broadcast %331 : vector<1x1xi1> to vector<1x128xi1>
    %335 = arith.andi %334, %333 : vector<1x128xi1>
    %336 = vector.shape_cast %335 : vector<1x128xi1> to vector<1x128xi1>
    %337 = vector.broadcast %336 : vector<1x128xi1> to vector<8x128xi1>
    %338 = vector.shape_cast %313 : vector<8x1xf32> to vector<8x1xf32>
    %339 = vector.broadcast %338 : vector<8x1xf32> to vector<8x128xf32>
    %340 = arith.select %337, %339, %245 : vector<8x128xi1>, vector<8x128xf32>
    %c1_i32_93 = arith.constant 1 : i32
    %341 = tpu.dynamic_rotate %250 by %c1_i32_93 dim 1 : vector<1x128xf32>, i32 -> vector<1x128xf32>
    %342 = arith.subf %341, %250 : vector<1x128xf32>
    %343 = vector.broadcast %329 : vector<1x1xf32> to vector<1x128xf32>
    %344 = arith.mulf %343, %342 : vector<1x128xf32>
    %345 = arith.addf %250, %344 : vector<1x128xf32>
    %346 = arith.subf %313, %254 : vector<8x1xf32>
    %347 = vector.broadcast %329 : vector<1x1xf32> to vector<8x1xf32>
    %348 = arith.mulf %347, %346 : vector<8x1xf32>
    %349 = arith.addf %254, %348 : vector<8x1xf32>
    %350 = arith.subf %322, %257 : vector<1x1xf32>
    %351 = arith.mulf %329, %350 : vector<1x1xf32>
    %352 = arith.addf %257, %351 : vector<1x1xf32>
    %c3_i32_94 = arith.constant 3 : i32
    %353 = arith.maximumf %258, %352 : vector<1x1xf32>
    %c2_i32_95 = arith.constant 2 : i32
    %354 = arith.muli %c2_i32_95, %c3_i32_94 : i32
    %355 = arith.index_cast %354 : i32 to index
    %356 = memref.load %arg0[%355] : memref<16xf32, #tpu.memory_space<smem>>
    %c2_i32_96 = arith.constant 2 : i32
    %357 = arith.muli %c2_i32_96, %c3_i32_94 : i32
    %c1_i32_97 = arith.constant 1 : i32
    %358 = arith.addi %357, %c1_i32_97 : i32
    %359 = arith.index_cast %358 : i32 to index
    %360 = memref.load %arg0[%359] : memref<16xf32, #tpu.memory_space<smem>>
    %361 = vector.broadcast %349 : vector<8x1xf32> to vector<8x128xf32>
    %362 = arith.mulf %361, %38 : vector<8x128xf32>
    %cst_98 = arith.constant dense<0.000000e+00> : vector<128xf32>
    %363 = vector.multi_reduction <add>, %362, %cst_98 [0] : vector<8x128xf32> to vector<128xf32>
    %364 = vector.shape_cast %363 : vector<128xf32> to vector<1x128xf32>
    %365 = arith.addf %39, %364 : vector<1x128xf32>
    %366 = arith.negf %365 : vector<1x128xf32>
    %367 = math.exp %366 : vector<1x128xf32>
    %cst_99 = arith.constant 1.000000e+00 : f32
    %368 = vector.broadcast %cst_99 : f32 to vector<1x128xf32>
    %369 = arith.addf %368, %367 : vector<1x128xf32>
    %370 = arith.divf %368, %369 : vector<1x128xf32>
    %371 = math.tanh %365 : vector<1x128xf32>
    %c64_i32_100 = arith.constant 64 : i32
    %372 = tpu.dynamic_rotate %371 by %c64_i32_100 dim 1 : vector<1x128xf32>, i32 -> vector<1x128xf32>
    %373 = arith.mulf %370, %372 : vector<1x128xf32>
    %c32_i32_101 = arith.constant 32 : i32
    %374 = tpu.dynamic_rotate %370 by %c32_i32_101 dim 1 : vector<1x128xf32>, i32 -> vector<1x128xf32>
    %375 = math.tanh %373 : vector<1x128xf32>
    %376 = arith.mulf %374, %375 : vector<1x128xf32>
    %377 = vector.broadcast %376 : vector<1x128xf32> to vector<8x128xf32>
    %378 = arith.mulf %377, %40 : vector<8x128xf32>
    %cst_102 = arith.constant dense<0.000000e+00> : vector<8xf32>
    %379 = vector.multi_reduction <add>, %378, %cst_102 [1] : vector<8x128xf32> to vector<8xf32>
    %380 = vector.shape_cast %379 : vector<8xf32> to vector<8x1xf32>
    %381 = arith.addf %380, %41 : vector<8x1xf32>
    %382 = math.tanh %381 : vector<8x1xf32>
    %383 = arith.mulf %382, %16 : vector<8x1xf32>
    %384 = math.exp %383 : vector<8x1xf32>
    %385 = arith.select %21, %382, %384 : vector<8x1xi1>, vector<8x1xf32>
    %cst_103 = arith.constant 0.000000e+00 : f32
    %386 = vector.broadcast %cst_103 : f32 to vector<8x1xf32>
    %387 = arith.select %26, %385, %386 : vector<8x1xi1>, vector<8x1xf32>
    %cst_104 = arith.constant dense<0.000000e+00> : vector<1xf32>
    %388 = vector.multi_reduction <add>, %387, %cst_104 [0] : vector<8x1xf32> to vector<1xf32>
    %389 = vector.shape_cast %388 : vector<1xf32> to vector<1x1xf32>
    %390 = tpu.reciprocal %389 {approx = true} : vector<1x1xf32> -> vector<1x1xf32>
    %c7_i32_105 = arith.constant 7 : i32
    %391 = tpu.dynamic_rotate %385 by %c7_i32_105 dim 0 : vector<8x1xf32>, i32 -> vector<8x1xf32>
    %c6_i32_106 = arith.constant 6 : i32
    %392 = tpu.dynamic_rotate %385 by %c6_i32_106 dim 0 : vector<8x1xf32>, i32 -> vector<8x1xf32>
    %393 = vector.broadcast %356 : f32 to vector<8x1xf32>
    %394 = arith.mulf %391, %393 : vector<8x1xf32>
    %395 = arith.addf %385, %394 : vector<8x1xf32>
    %cst_107 = arith.constant 0.000000e+00 : f32
    %396 = vector.broadcast %cst_107 : f32 to vector<8x1xf32>
    %397 = arith.select %33, %395, %396 : vector<8x1xi1>, vector<8x1xf32>
    %398 = vector.broadcast %360 : f32 to vector<8x1xf32>
    %399 = arith.mulf %392, %398 : vector<8x1xf32>
    %400 = arith.addf %391, %399 : vector<8x1xf32>
    %cst_108 = arith.constant 0.000000e+00 : f32
    %401 = vector.broadcast %cst_108 : f32 to vector<8x1xf32>
    %402 = arith.select %35, %400, %401 : vector<8x1xi1>, vector<8x1xf32>
    %403 = arith.addf %397, %402 : vector<8x1xf32>
    %404 = vector.broadcast %390 : vector<1x1xf32> to vector<8x1xf32>
    %405 = arith.mulf %392, %404 : vector<8x1xf32>
    %cst_109 = arith.constant 0.000000e+00 : f32
    %406 = vector.broadcast %cst_109 : f32 to vector<8x1xf32>
    %407 = arith.select %31, %405, %406 : vector<8x1xi1>, vector<8x1xf32>
    %408 = arith.addf %403, %407 : vector<8x1xf32>
    %409 = arith.cmpf ogt, %392, %385 : vector<8x1xf32>
    %410 = arith.cmpf ogt, %392, %391 : vector<8x1xf32>
    %411 = arith.andi %409, %410 : vector<8x1xi1>
    %412 = arith.extui %411 : vector<8x1xi1> to vector<8x1xi32>
    %413 = arith.sitofp %412 : vector<8x1xi32> to vector<8x1xf32>
    %cst_110 = arith.constant 0.000000e+00 : f32
    %414 = vector.broadcast %cst_110 : f32 to vector<8x1xf32>
    %415 = arith.select %37, %413, %414 : vector<8x1xi1>, vector<8x1xf32>
    %cst_111 = arith.constant dense<0.000000e+00> : vector<1xf32>
    %416 = vector.multi_reduction <add>, %415, %cst_111 [0] : vector<8x1xf32> to vector<1xf32>
    %417 = vector.shape_cast %416 : vector<1xf32> to vector<1x1xf32>
    %cst_112 = arith.constant 1.000000e+00 : f32
    %418 = vector.broadcast %cst_112 : f32 to vector<1x1xf32>
    %419 = arith.subf %418, %353 : vector<1x1xf32>
    %c0_i32_113 = arith.constant 0 : i32
    %420 = arith.cmpi sgt, %c3_i32_94, %c0_i32_113 : i32
    %421 = arith.extui %420 : i1 to i32
    %422 = arith.sitofp %421 : i32 to f32
    %423 = vector.broadcast %422 : f32 to vector<1x1xf32>
    %424 = arith.mulf %419, %423 : vector<1x1xf32>
    %cst_114 = arith.constant 0.000000e+00 : f32
    %425 = vector.broadcast %cst_114 : f32 to vector<1x1xf32>
    %426 = arith.cmpf ogt, %424, %425 : vector<1x1xf32>
    %cst_115 = arith.constant 5.000000e-01 : f32
    %427 = vector.broadcast %cst_115 : f32 to vector<1x128xf32>
    %428 = arith.cmpf ogt, %345, %427 : vector<1x128xf32>
    %429 = vector.broadcast %426 : vector<1x1xi1> to vector<1x128xi1>
    %430 = arith.andi %429, %428 : vector<1x128xi1>
    %431 = vector.shape_cast %430 : vector<1x128xi1> to vector<1x128xi1>
    %432 = vector.broadcast %431 : vector<1x128xi1> to vector<8x128xi1>
    %433 = vector.shape_cast %408 : vector<8x1xf32> to vector<8x1xf32>
    %434 = vector.broadcast %433 : vector<8x1xf32> to vector<8x128xf32>
    %435 = arith.select %432, %434, %340 : vector<8x128xi1>, vector<8x128xf32>
    %c1_i32_116 = arith.constant 1 : i32
    %436 = tpu.dynamic_rotate %345 by %c1_i32_116 dim 1 : vector<1x128xf32>, i32 -> vector<1x128xf32>
    %437 = arith.subf %436, %345 : vector<1x128xf32>
    %438 = vector.broadcast %424 : vector<1x1xf32> to vector<1x128xf32>
    %439 = arith.mulf %438, %437 : vector<1x128xf32>
    %440 = arith.addf %345, %439 : vector<1x128xf32>
    %441 = arith.subf %408, %349 : vector<8x1xf32>
    %442 = vector.broadcast %424 : vector<1x1xf32> to vector<8x1xf32>
    %443 = arith.mulf %442, %441 : vector<8x1xf32>
    %444 = arith.addf %349, %443 : vector<8x1xf32>
    %445 = arith.subf %417, %352 : vector<1x1xf32>
    %446 = arith.mulf %424, %445 : vector<1x1xf32>
    %447 = arith.addf %352, %446 : vector<1x1xf32>
    %c4_i32_117 = arith.constant 4 : i32
    %448 = arith.maximumf %353, %447 : vector<1x1xf32>
    %c2_i32_118 = arith.constant 2 : i32
    %449 = arith.muli %c2_i32_118, %c4_i32_117 : i32
    %450 = arith.index_cast %449 : i32 to index
    %451 = memref.load %arg0[%450] : memref<16xf32, #tpu.memory_space<smem>>
    %c2_i32_119 = arith.constant 2 : i32
    %452 = arith.muli %c2_i32_119, %c4_i32_117 : i32
    %c1_i32_120 = arith.constant 1 : i32
    %453 = arith.addi %452, %c1_i32_120 : i32
    %454 = arith.index_cast %453 : i32 to index
    %455 = memref.load %arg0[%454] : memref<16xf32, #tpu.memory_space<smem>>
    %456 = vector.broadcast %444 : vector<8x1xf32> to vector<8x128xf32>
    %457 = arith.mulf %456, %38 : vector<8x128xf32>
    %cst_121 = arith.constant dense<0.000000e+00> : vector<128xf32>
    %458 = vector.multi_reduction <add>, %457, %cst_121 [0] : vector<8x128xf32> to vector<128xf32>
    %459 = vector.shape_cast %458 : vector<128xf32> to vector<1x128xf32>
    %460 = arith.addf %39, %459 : vector<1x128xf32>
    %461 = arith.negf %460 : vector<1x128xf32>
    %462 = math.exp %461 : vector<1x128xf32>
    %cst_122 = arith.constant 1.000000e+00 : f32
    %463 = vector.broadcast %cst_122 : f32 to vector<1x128xf32>
    %464 = arith.addf %463, %462 : vector<1x128xf32>
    %465 = arith.divf %463, %464 : vector<1x128xf32>
    %466 = math.tanh %460 : vector<1x128xf32>
    %c64_i32_123 = arith.constant 64 : i32
    %467 = tpu.dynamic_rotate %466 by %c64_i32_123 dim 1 : vector<1x128xf32>, i32 -> vector<1x128xf32>
    %468 = arith.mulf %465, %467 : vector<1x128xf32>
    %c32_i32_124 = arith.constant 32 : i32
    %469 = tpu.dynamic_rotate %465 by %c32_i32_124 dim 1 : vector<1x128xf32>, i32 -> vector<1x128xf32>
    %470 = math.tanh %468 : vector<1x128xf32>
    %471 = arith.mulf %469, %470 : vector<1x128xf32>
    %472 = vector.broadcast %471 : vector<1x128xf32> to vector<8x128xf32>
    %473 = arith.mulf %472, %40 : vector<8x128xf32>
    %cst_125 = arith.constant dense<0.000000e+00> : vector<8xf32>
    %474 = vector.multi_reduction <add>, %473, %cst_125 [1] : vector<8x128xf32> to vector<8xf32>
    %475 = vector.shape_cast %474 : vector<8xf32> to vector<8x1xf32>
    %476 = arith.addf %475, %41 : vector<8x1xf32>
    %477 = math.tanh %476 : vector<8x1xf32>
    %478 = arith.mulf %477, %16 : vector<8x1xf32>
    %479 = math.exp %478 : vector<8x1xf32>
    %480 = arith.select %21, %477, %479 : vector<8x1xi1>, vector<8x1xf32>
    %cst_126 = arith.constant 0.000000e+00 : f32
    %481 = vector.broadcast %cst_126 : f32 to vector<8x1xf32>
    %482 = arith.select %26, %480, %481 : vector<8x1xi1>, vector<8x1xf32>
    %cst_127 = arith.constant dense<0.000000e+00> : vector<1xf32>
    %483 = vector.multi_reduction <add>, %482, %cst_127 [0] : vector<8x1xf32> to vector<1xf32>
    %484 = vector.shape_cast %483 : vector<1xf32> to vector<1x1xf32>
    %485 = tpu.reciprocal %484 {approx = true} : vector<1x1xf32> -> vector<1x1xf32>
    %c7_i32_128 = arith.constant 7 : i32
    %486 = tpu.dynamic_rotate %480 by %c7_i32_128 dim 0 : vector<8x1xf32>, i32 -> vector<8x1xf32>
    %c6_i32_129 = arith.constant 6 : i32
    %487 = tpu.dynamic_rotate %480 by %c6_i32_129 dim 0 : vector<8x1xf32>, i32 -> vector<8x1xf32>
    %488 = vector.broadcast %451 : f32 to vector<8x1xf32>
    %489 = arith.mulf %486, %488 : vector<8x1xf32>
    %490 = arith.addf %480, %489 : vector<8x1xf32>
    %cst_130 = arith.constant 0.000000e+00 : f32
    %491 = vector.broadcast %cst_130 : f32 to vector<8x1xf32>
    %492 = arith.select %33, %490, %491 : vector<8x1xi1>, vector<8x1xf32>
    %493 = vector.broadcast %455 : f32 to vector<8x1xf32>
    %494 = arith.mulf %487, %493 : vector<8x1xf32>
    %495 = arith.addf %486, %494 : vector<8x1xf32>
    %cst_131 = arith.constant 0.000000e+00 : f32
    %496 = vector.broadcast %cst_131 : f32 to vector<8x1xf32>
    %497 = arith.select %35, %495, %496 : vector<8x1xi1>, vector<8x1xf32>
    %498 = arith.addf %492, %497 : vector<8x1xf32>
    %499 = vector.broadcast %485 : vector<1x1xf32> to vector<8x1xf32>
    %500 = arith.mulf %487, %499 : vector<8x1xf32>
    %cst_132 = arith.constant 0.000000e+00 : f32
    %501 = vector.broadcast %cst_132 : f32 to vector<8x1xf32>
    %502 = arith.select %31, %500, %501 : vector<8x1xi1>, vector<8x1xf32>
    %503 = arith.addf %498, %502 : vector<8x1xf32>
    %504 = arith.cmpf ogt, %487, %480 : vector<8x1xf32>
    %505 = arith.cmpf ogt, %487, %486 : vector<8x1xf32>
    %506 = arith.andi %504, %505 : vector<8x1xi1>
    %507 = arith.extui %506 : vector<8x1xi1> to vector<8x1xi32>
    %508 = arith.sitofp %507 : vector<8x1xi32> to vector<8x1xf32>
    %cst_133 = arith.constant 0.000000e+00 : f32
    %509 = vector.broadcast %cst_133 : f32 to vector<8x1xf32>
    %510 = arith.select %37, %508, %509 : vector<8x1xi1>, vector<8x1xf32>
    %cst_134 = arith.constant dense<0.000000e+00> : vector<1xf32>
    %511 = vector.multi_reduction <add>, %510, %cst_134 [0] : vector<8x1xf32> to vector<1xf32>
    %512 = vector.shape_cast %511 : vector<1xf32> to vector<1x1xf32>
    %cst_135 = arith.constant 1.000000e+00 : f32
    %513 = vector.broadcast %cst_135 : f32 to vector<1x1xf32>
    %514 = arith.subf %513, %448 : vector<1x1xf32>
    %c0_i32_136 = arith.constant 0 : i32
    %515 = arith.cmpi sgt, %c4_i32_117, %c0_i32_136 : i32
    %516 = arith.extui %515 : i1 to i32
    %517 = arith.sitofp %516 : i32 to f32
    %518 = vector.broadcast %517 : f32 to vector<1x1xf32>
    %519 = arith.mulf %514, %518 : vector<1x1xf32>
    %cst_137 = arith.constant 0.000000e+00 : f32
    %520 = vector.broadcast %cst_137 : f32 to vector<1x1xf32>
    %521 = arith.cmpf ogt, %519, %520 : vector<1x1xf32>
    %cst_138 = arith.constant 5.000000e-01 : f32
    %522 = vector.broadcast %cst_138 : f32 to vector<1x128xf32>
    %523 = arith.cmpf ogt, %440, %522 : vector<1x128xf32>
    %524 = vector.broadcast %521 : vector<1x1xi1> to vector<1x128xi1>
    %525 = arith.andi %524, %523 : vector<1x128xi1>
    %526 = vector.shape_cast %525 : vector<1x128xi1> to vector<1x128xi1>
    %527 = vector.broadcast %526 : vector<1x128xi1> to vector<8x128xi1>
    %528 = vector.shape_cast %503 : vector<8x1xf32> to vector<8x1xf32>
    %529 = vector.broadcast %528 : vector<8x1xf32> to vector<8x128xf32>
    %530 = arith.select %527, %529, %435 : vector<8x128xi1>, vector<8x128xf32>
    %c1_i32_139 = arith.constant 1 : i32
    %531 = tpu.dynamic_rotate %440 by %c1_i32_139 dim 1 : vector<1x128xf32>, i32 -> vector<1x128xf32>
    %532 = arith.subf %531, %440 : vector<1x128xf32>
    %533 = vector.broadcast %519 : vector<1x1xf32> to vector<1x128xf32>
    %534 = arith.mulf %533, %532 : vector<1x128xf32>
    %535 = arith.addf %440, %534 : vector<1x128xf32>
    %536 = arith.subf %503, %444 : vector<8x1xf32>
    %537 = vector.broadcast %519 : vector<1x1xf32> to vector<8x1xf32>
    %538 = arith.mulf %537, %536 : vector<8x1xf32>
    %539 = arith.addf %444, %538 : vector<8x1xf32>
    %540 = arith.subf %512, %447 : vector<1x1xf32>
    %541 = arith.mulf %519, %540 : vector<1x1xf32>
    %542 = arith.addf %447, %541 : vector<1x1xf32>
    %c5_i32 = arith.constant 5 : i32
    %543 = arith.maximumf %448, %542 : vector<1x1xf32>
    %c2_i32_140 = arith.constant 2 : i32
    %544 = arith.muli %c2_i32_140, %c5_i32 : i32
    %545 = arith.index_cast %544 : i32 to index
    %546 = memref.load %arg0[%545] : memref<16xf32, #tpu.memory_space<smem>>
    %c2_i32_141 = arith.constant 2 : i32
    %547 = arith.muli %c2_i32_141, %c5_i32 : i32
    %c1_i32_142 = arith.constant 1 : i32
    %548 = arith.addi %547, %c1_i32_142 : i32
    %549 = arith.index_cast %548 : i32 to index
    %550 = memref.load %arg0[%549] : memref<16xf32, #tpu.memory_space<smem>>
    %551 = vector.broadcast %539 : vector<8x1xf32> to vector<8x128xf32>
    %552 = arith.mulf %551, %38 : vector<8x128xf32>
    %cst_143 = arith.constant dense<0.000000e+00> : vector<128xf32>
    %553 = vector.multi_reduction <add>, %552, %cst_143 [0] : vector<8x128xf32> to vector<128xf32>
    %554 = vector.shape_cast %553 : vector<128xf32> to vector<1x128xf32>
    %555 = arith.addf %39, %554 : vector<1x128xf32>
    %556 = arith.negf %555 : vector<1x128xf32>
    %557 = math.exp %556 : vector<1x128xf32>
    %cst_144 = arith.constant 1.000000e+00 : f32
    %558 = vector.broadcast %cst_144 : f32 to vector<1x128xf32>
    %559 = arith.addf %558, %557 : vector<1x128xf32>
    %560 = arith.divf %558, %559 : vector<1x128xf32>
    %561 = math.tanh %555 : vector<1x128xf32>
    %c64_i32_145 = arith.constant 64 : i32
    %562 = tpu.dynamic_rotate %561 by %c64_i32_145 dim 1 : vector<1x128xf32>, i32 -> vector<1x128xf32>
    %563 = arith.mulf %560, %562 : vector<1x128xf32>
    %c32_i32_146 = arith.constant 32 : i32
    %564 = tpu.dynamic_rotate %560 by %c32_i32_146 dim 1 : vector<1x128xf32>, i32 -> vector<1x128xf32>
    %565 = math.tanh %563 : vector<1x128xf32>
    %566 = arith.mulf %564, %565 : vector<1x128xf32>
    %567 = vector.broadcast %566 : vector<1x128xf32> to vector<8x128xf32>
    %568 = arith.mulf %567, %40 : vector<8x128xf32>
    %cst_147 = arith.constant dense<0.000000e+00> : vector<8xf32>
    %569 = vector.multi_reduction <add>, %568, %cst_147 [1] : vector<8x128xf32> to vector<8xf32>
    %570 = vector.shape_cast %569 : vector<8xf32> to vector<8x1xf32>
    %571 = arith.addf %570, %41 : vector<8x1xf32>
    %572 = math.tanh %571 : vector<8x1xf32>
    %573 = arith.mulf %572, %16 : vector<8x1xf32>
    %574 = math.exp %573 : vector<8x1xf32>
    %575 = arith.select %21, %572, %574 : vector<8x1xi1>, vector<8x1xf32>
    %cst_148 = arith.constant 0.000000e+00 : f32
    %576 = vector.broadcast %cst_148 : f32 to vector<8x1xf32>
    %577 = arith.select %26, %575, %576 : vector<8x1xi1>, vector<8x1xf32>
    %cst_149 = arith.constant dense<0.000000e+00> : vector<1xf32>
    %578 = vector.multi_reduction <add>, %577, %cst_149 [0] : vector<8x1xf32> to vector<1xf32>
    %579 = vector.shape_cast %578 : vector<1xf32> to vector<1x1xf32>
    %580 = tpu.reciprocal %579 {approx = true} : vector<1x1xf32> -> vector<1x1xf32>
    %c7_i32_150 = arith.constant 7 : i32
    %581 = tpu.dynamic_rotate %575 by %c7_i32_150 dim 0 : vector<8x1xf32>, i32 -> vector<8x1xf32>
    %c6_i32_151 = arith.constant 6 : i32
    %582 = tpu.dynamic_rotate %575 by %c6_i32_151 dim 0 : vector<8x1xf32>, i32 -> vector<8x1xf32>
    %583 = vector.broadcast %546 : f32 to vector<8x1xf32>
    %584 = arith.mulf %581, %583 : vector<8x1xf32>
    %585 = arith.addf %575, %584 : vector<8x1xf32>
    %cst_152 = arith.constant 0.000000e+00 : f32
    %586 = vector.broadcast %cst_152 : f32 to vector<8x1xf32>
    %587 = arith.select %33, %585, %586 : vector<8x1xi1>, vector<8x1xf32>
    %588 = vector.broadcast %550 : f32 to vector<8x1xf32>
    %589 = arith.mulf %582, %588 : vector<8x1xf32>
    %590 = arith.addf %581, %589 : vector<8x1xf32>
    %cst_153 = arith.constant 0.000000e+00 : f32
    %591 = vector.broadcast %cst_153 : f32 to vector<8x1xf32>
    %592 = arith.select %35, %590, %591 : vector<8x1xi1>, vector<8x1xf32>
    %593 = arith.addf %587, %592 : vector<8x1xf32>
    %594 = vector.broadcast %580 : vector<1x1xf32> to vector<8x1xf32>
    %595 = arith.mulf %582, %594 : vector<8x1xf32>
    %cst_154 = arith.constant 0.000000e+00 : f32
    %596 = vector.broadcast %cst_154 : f32 to vector<8x1xf32>
    %597 = arith.select %31, %595, %596 : vector<8x1xi1>, vector<8x1xf32>
    %598 = arith.addf %593, %597 : vector<8x1xf32>
    %599 = arith.cmpf ogt, %582, %575 : vector<8x1xf32>
    %600 = arith.cmpf ogt, %582, %581 : vector<8x1xf32>
    %601 = arith.andi %599, %600 : vector<8x1xi1>
    %602 = arith.extui %601 : vector<8x1xi1> to vector<8x1xi32>
    %603 = arith.sitofp %602 : vector<8x1xi32> to vector<8x1xf32>
    %cst_155 = arith.constant 0.000000e+00 : f32
    %604 = vector.broadcast %cst_155 : f32 to vector<8x1xf32>
    %605 = arith.select %37, %603, %604 : vector<8x1xi1>, vector<8x1xf32>
    %cst_156 = arith.constant dense<0.000000e+00> : vector<1xf32>
    %606 = vector.multi_reduction <add>, %605, %cst_156 [0] : vector<8x1xf32> to vector<1xf32>
    %607 = vector.shape_cast %606 : vector<1xf32> to vector<1x1xf32>
    %cst_157 = arith.constant 1.000000e+00 : f32
    %608 = vector.broadcast %cst_157 : f32 to vector<1x1xf32>
    %609 = arith.subf %608, %543 : vector<1x1xf32>
    %c0_i32_158 = arith.constant 0 : i32
    %610 = arith.cmpi sgt, %c5_i32, %c0_i32_158 : i32
    %611 = arith.extui %610 : i1 to i32
    %612 = arith.sitofp %611 : i32 to f32
    %613 = vector.broadcast %612 : f32 to vector<1x1xf32>
    %614 = arith.mulf %609, %613 : vector<1x1xf32>
    %cst_159 = arith.constant 0.000000e+00 : f32
    %615 = vector.broadcast %cst_159 : f32 to vector<1x1xf32>
    %616 = arith.cmpf ogt, %614, %615 : vector<1x1xf32>
    %cst_160 = arith.constant 5.000000e-01 : f32
    %617 = vector.broadcast %cst_160 : f32 to vector<1x128xf32>
    %618 = arith.cmpf ogt, %535, %617 : vector<1x128xf32>
    %619 = vector.broadcast %616 : vector<1x1xi1> to vector<1x128xi1>
    %620 = arith.andi %619, %618 : vector<1x128xi1>
    %621 = vector.shape_cast %620 : vector<1x128xi1> to vector<1x128xi1>
    %622 = vector.broadcast %621 : vector<1x128xi1> to vector<8x128xi1>
    %623 = vector.shape_cast %598 : vector<8x1xf32> to vector<8x1xf32>
    %624 = vector.broadcast %623 : vector<8x1xf32> to vector<8x128xf32>
    %625 = arith.select %622, %624, %530 : vector<8x128xi1>, vector<8x128xf32>
    %c1_i32_161 = arith.constant 1 : i32
    %626 = tpu.dynamic_rotate %535 by %c1_i32_161 dim 1 : vector<1x128xf32>, i32 -> vector<1x128xf32>
    %627 = arith.subf %626, %535 : vector<1x128xf32>
    %628 = vector.broadcast %614 : vector<1x1xf32> to vector<1x128xf32>
    %629 = arith.mulf %628, %627 : vector<1x128xf32>
    %630 = arith.addf %535, %629 : vector<1x128xf32>
    %631 = arith.subf %598, %539 : vector<8x1xf32>
    %632 = vector.broadcast %614 : vector<1x1xf32> to vector<8x1xf32>
    %633 = arith.mulf %632, %631 : vector<8x1xf32>
    %634 = arith.addf %539, %633 : vector<8x1xf32>
    %635 = arith.subf %607, %542 : vector<1x1xf32>
    %636 = arith.mulf %614, %635 : vector<1x1xf32>
    %637 = arith.addf %542, %636 : vector<1x1xf32>
    %c6_i32_162 = arith.constant 6 : i32
    %638 = arith.maximumf %543, %637 : vector<1x1xf32>
    %c2_i32_163 = arith.constant 2 : i32
    %639 = arith.muli %c2_i32_163, %c6_i32_162 : i32
    %640 = arith.index_cast %639 : i32 to index
    %641 = memref.load %arg0[%640] : memref<16xf32, #tpu.memory_space<smem>>
    %c2_i32_164 = arith.constant 2 : i32
    %642 = arith.muli %c2_i32_164, %c6_i32_162 : i32
    %c1_i32_165 = arith.constant 1 : i32
    %643 = arith.addi %642, %c1_i32_165 : i32
    %644 = arith.index_cast %643 : i32 to index
    %645 = memref.load %arg0[%644] : memref<16xf32, #tpu.memory_space<smem>>
    %646 = vector.broadcast %634 : vector<8x1xf32> to vector<8x128xf32>
    %647 = arith.mulf %646, %38 : vector<8x128xf32>
    %cst_166 = arith.constant dense<0.000000e+00> : vector<128xf32>
    %648 = vector.multi_reduction <add>, %647, %cst_166 [0] : vector<8x128xf32> to vector<128xf32>
    %649 = vector.shape_cast %648 : vector<128xf32> to vector<1x128xf32>
    %650 = arith.addf %39, %649 : vector<1x128xf32>
    %651 = arith.negf %650 : vector<1x128xf32>
    %652 = math.exp %651 : vector<1x128xf32>
    %cst_167 = arith.constant 1.000000e+00 : f32
    %653 = vector.broadcast %cst_167 : f32 to vector<1x128xf32>
    %654 = arith.addf %653, %652 : vector<1x128xf32>
    %655 = arith.divf %653, %654 : vector<1x128xf32>
    %656 = math.tanh %650 : vector<1x128xf32>
    %c64_i32_168 = arith.constant 64 : i32
    %657 = tpu.dynamic_rotate %656 by %c64_i32_168 dim 1 : vector<1x128xf32>, i32 -> vector<1x128xf32>
    %658 = arith.mulf %655, %657 : vector<1x128xf32>
    %c32_i32_169 = arith.constant 32 : i32
    %659 = tpu.dynamic_rotate %655 by %c32_i32_169 dim 1 : vector<1x128xf32>, i32 -> vector<1x128xf32>
    %660 = math.tanh %658 : vector<1x128xf32>
    %661 = arith.mulf %659, %660 : vector<1x128xf32>
    %662 = vector.broadcast %661 : vector<1x128xf32> to vector<8x128xf32>
    %663 = arith.mulf %662, %40 : vector<8x128xf32>
    %cst_170 = arith.constant dense<0.000000e+00> : vector<8xf32>
    %664 = vector.multi_reduction <add>, %663, %cst_170 [1] : vector<8x128xf32> to vector<8xf32>
    %665 = vector.shape_cast %664 : vector<8xf32> to vector<8x1xf32>
    %666 = arith.addf %665, %41 : vector<8x1xf32>
    %667 = math.tanh %666 : vector<8x1xf32>
    %668 = arith.mulf %667, %16 : vector<8x1xf32>
    %669 = math.exp %668 : vector<8x1xf32>
    %670 = arith.select %21, %667, %669 : vector<8x1xi1>, vector<8x1xf32>
    %cst_171 = arith.constant 0.000000e+00 : f32
    %671 = vector.broadcast %cst_171 : f32 to vector<8x1xf32>
    %672 = arith.select %26, %670, %671 : vector<8x1xi1>, vector<8x1xf32>
    %cst_172 = arith.constant dense<0.000000e+00> : vector<1xf32>
    %673 = vector.multi_reduction <add>, %672, %cst_172 [0] : vector<8x1xf32> to vector<1xf32>
    %674 = vector.shape_cast %673 : vector<1xf32> to vector<1x1xf32>
    %675 = tpu.reciprocal %674 {approx = true} : vector<1x1xf32> -> vector<1x1xf32>
    %c7_i32_173 = arith.constant 7 : i32
    %676 = tpu.dynamic_rotate %670 by %c7_i32_173 dim 0 : vector<8x1xf32>, i32 -> vector<8x1xf32>
    %c6_i32_174 = arith.constant 6 : i32
    %677 = tpu.dynamic_rotate %670 by %c6_i32_174 dim 0 : vector<8x1xf32>, i32 -> vector<8x1xf32>
    %678 = vector.broadcast %641 : f32 to vector<8x1xf32>
    %679 = arith.mulf %676, %678 : vector<8x1xf32>
    %680 = arith.addf %670, %679 : vector<8x1xf32>
    %cst_175 = arith.constant 0.000000e+00 : f32
    %681 = vector.broadcast %cst_175 : f32 to vector<8x1xf32>
    %682 = arith.select %33, %680, %681 : vector<8x1xi1>, vector<8x1xf32>
    %683 = vector.broadcast %645 : f32 to vector<8x1xf32>
    %684 = arith.mulf %677, %683 : vector<8x1xf32>
    %685 = arith.addf %676, %684 : vector<8x1xf32>
    %cst_176 = arith.constant 0.000000e+00 : f32
    %686 = vector.broadcast %cst_176 : f32 to vector<8x1xf32>
    %687 = arith.select %35, %685, %686 : vector<8x1xi1>, vector<8x1xf32>
    %688 = arith.addf %682, %687 : vector<8x1xf32>
    %689 = vector.broadcast %675 : vector<1x1xf32> to vector<8x1xf32>
    %690 = arith.mulf %677, %689 : vector<8x1xf32>
    %cst_177 = arith.constant 0.000000e+00 : f32
    %691 = vector.broadcast %cst_177 : f32 to vector<8x1xf32>
    %692 = arith.select %31, %690, %691 : vector<8x1xi1>, vector<8x1xf32>
    %693 = arith.addf %688, %692 : vector<8x1xf32>
    %694 = arith.cmpf ogt, %677, %670 : vector<8x1xf32>
    %695 = arith.cmpf ogt, %677, %676 : vector<8x1xf32>
    %696 = arith.andi %694, %695 : vector<8x1xi1>
    %697 = arith.extui %696 : vector<8x1xi1> to vector<8x1xi32>
    %698 = arith.sitofp %697 : vector<8x1xi32> to vector<8x1xf32>
    %cst_178 = arith.constant 0.000000e+00 : f32
    %699 = vector.broadcast %cst_178 : f32 to vector<8x1xf32>
    %700 = arith.select %37, %698, %699 : vector<8x1xi1>, vector<8x1xf32>
    %cst_179 = arith.constant dense<0.000000e+00> : vector<1xf32>
    %701 = vector.multi_reduction <add>, %700, %cst_179 [0] : vector<8x1xf32> to vector<1xf32>
    %702 = vector.shape_cast %701 : vector<1xf32> to vector<1x1xf32>
    %cst_180 = arith.constant 1.000000e+00 : f32
    %703 = vector.broadcast %cst_180 : f32 to vector<1x1xf32>
    %704 = arith.subf %703, %638 : vector<1x1xf32>
    %c0_i32_181 = arith.constant 0 : i32
    %705 = arith.cmpi sgt, %c6_i32_162, %c0_i32_181 : i32
    %706 = arith.extui %705 : i1 to i32
    %707 = arith.sitofp %706 : i32 to f32
    %708 = vector.broadcast %707 : f32 to vector<1x1xf32>
    %709 = arith.mulf %704, %708 : vector<1x1xf32>
    %cst_182 = arith.constant 0.000000e+00 : f32
    %710 = vector.broadcast %cst_182 : f32 to vector<1x1xf32>
    %711 = arith.cmpf ogt, %709, %710 : vector<1x1xf32>
    %cst_183 = arith.constant 5.000000e-01 : f32
    %712 = vector.broadcast %cst_183 : f32 to vector<1x128xf32>
    %713 = arith.cmpf ogt, %630, %712 : vector<1x128xf32>
    %714 = vector.broadcast %711 : vector<1x1xi1> to vector<1x128xi1>
    %715 = arith.andi %714, %713 : vector<1x128xi1>
    %716 = vector.shape_cast %715 : vector<1x128xi1> to vector<1x128xi1>
    %717 = vector.broadcast %716 : vector<1x128xi1> to vector<8x128xi1>
    %718 = vector.shape_cast %693 : vector<8x1xf32> to vector<8x1xf32>
    %719 = vector.broadcast %718 : vector<8x1xf32> to vector<8x128xf32>
    %720 = arith.select %717, %719, %625 : vector<8x128xi1>, vector<8x128xf32>
    %c1_i32_184 = arith.constant 1 : i32
    %721 = tpu.dynamic_rotate %630 by %c1_i32_184 dim 1 : vector<1x128xf32>, i32 -> vector<1x128xf32>
    %722 = arith.subf %721, %630 : vector<1x128xf32>
    %723 = vector.broadcast %709 : vector<1x1xf32> to vector<1x128xf32>
    %724 = arith.mulf %723, %722 : vector<1x128xf32>
    %725 = arith.addf %630, %724 : vector<1x128xf32>
    %726 = arith.subf %693, %634 : vector<8x1xf32>
    %727 = vector.broadcast %709 : vector<1x1xf32> to vector<8x1xf32>
    %728 = arith.mulf %727, %726 : vector<8x1xf32>
    %729 = arith.addf %634, %728 : vector<8x1xf32>
    %730 = arith.subf %702, %637 : vector<1x1xf32>
    %731 = arith.mulf %709, %730 : vector<1x1xf32>
    %732 = arith.addf %637, %731 : vector<1x1xf32>
    %c7_i32_185 = arith.constant 7 : i32
    %733 = arith.maximumf %638, %732 : vector<1x1xf32>
    %c2_i32_186 = arith.constant 2 : i32
    %734 = arith.muli %c2_i32_186, %c7_i32_185 : i32
    %735 = arith.index_cast %734 : i32 to index
    %736 = memref.load %arg0[%735] : memref<16xf32, #tpu.memory_space<smem>>
    %c2_i32_187 = arith.constant 2 : i32
    %737 = arith.muli %c2_i32_187, %c7_i32_185 : i32
    %c1_i32_188 = arith.constant 1 : i32
    %738 = arith.addi %737, %c1_i32_188 : i32
    %739 = arith.index_cast %738 : i32 to index
    %740 = memref.load %arg0[%739] : memref<16xf32, #tpu.memory_space<smem>>
    %741 = vector.broadcast %729 : vector<8x1xf32> to vector<8x128xf32>
    %742 = arith.mulf %741, %38 : vector<8x128xf32>
    %cst_189 = arith.constant dense<0.000000e+00> : vector<128xf32>
    %743 = vector.multi_reduction <add>, %742, %cst_189 [0] : vector<8x128xf32> to vector<128xf32>
    %744 = vector.shape_cast %743 : vector<128xf32> to vector<1x128xf32>
    %745 = arith.addf %39, %744 : vector<1x128xf32>
    %746 = arith.negf %745 : vector<1x128xf32>
    %747 = math.exp %746 : vector<1x128xf32>
    %cst_190 = arith.constant 1.000000e+00 : f32
    %748 = vector.broadcast %cst_190 : f32 to vector<1x128xf32>
    %749 = arith.addf %748, %747 : vector<1x128xf32>
    %750 = arith.divf %748, %749 : vector<1x128xf32>
    %751 = math.tanh %745 : vector<1x128xf32>
    %c64_i32_191 = arith.constant 64 : i32
    %752 = tpu.dynamic_rotate %751 by %c64_i32_191 dim 1 : vector<1x128xf32>, i32 -> vector<1x128xf32>
    %753 = arith.mulf %750, %752 : vector<1x128xf32>
    %c32_i32_192 = arith.constant 32 : i32
    %754 = tpu.dynamic_rotate %750 by %c32_i32_192 dim 1 : vector<1x128xf32>, i32 -> vector<1x128xf32>
    %755 = math.tanh %753 : vector<1x128xf32>
    %756 = arith.mulf %754, %755 : vector<1x128xf32>
    %757 = vector.broadcast %756 : vector<1x128xf32> to vector<8x128xf32>
    %758 = arith.mulf %757, %40 : vector<8x128xf32>
    %cst_193 = arith.constant dense<0.000000e+00> : vector<8xf32>
    %759 = vector.multi_reduction <add>, %758, %cst_193 [1] : vector<8x128xf32> to vector<8xf32>
    %760 = vector.shape_cast %759 : vector<8xf32> to vector<8x1xf32>
    %761 = arith.addf %760, %41 : vector<8x1xf32>
    %762 = math.tanh %761 : vector<8x1xf32>
    %763 = arith.mulf %762, %16 : vector<8x1xf32>
    %764 = math.exp %763 : vector<8x1xf32>
    %765 = arith.select %21, %762, %764 : vector<8x1xi1>, vector<8x1xf32>
    %cst_194 = arith.constant 0.000000e+00 : f32
    %766 = vector.broadcast %cst_194 : f32 to vector<8x1xf32>
    %767 = arith.select %26, %765, %766 : vector<8x1xi1>, vector<8x1xf32>
    %cst_195 = arith.constant dense<0.000000e+00> : vector<1xf32>
    %768 = vector.multi_reduction <add>, %767, %cst_195 [0] : vector<8x1xf32> to vector<1xf32>
    %769 = vector.shape_cast %768 : vector<1xf32> to vector<1x1xf32>
    %770 = tpu.reciprocal %769 {approx = true} : vector<1x1xf32> -> vector<1x1xf32>
    %c7_i32_196 = arith.constant 7 : i32
    %771 = tpu.dynamic_rotate %765 by %c7_i32_196 dim 0 : vector<8x1xf32>, i32 -> vector<8x1xf32>
    %c6_i32_197 = arith.constant 6 : i32
    %772 = tpu.dynamic_rotate %765 by %c6_i32_197 dim 0 : vector<8x1xf32>, i32 -> vector<8x1xf32>
    %773 = vector.broadcast %736 : f32 to vector<8x1xf32>
    %774 = arith.mulf %771, %773 : vector<8x1xf32>
    %775 = arith.addf %765, %774 : vector<8x1xf32>
    %cst_198 = arith.constant 0.000000e+00 : f32
    %776 = vector.broadcast %cst_198 : f32 to vector<8x1xf32>
    %777 = arith.select %33, %775, %776 : vector<8x1xi1>, vector<8x1xf32>
    %778 = vector.broadcast %740 : f32 to vector<8x1xf32>
    %779 = arith.mulf %772, %778 : vector<8x1xf32>
    %780 = arith.addf %771, %779 : vector<8x1xf32>
    %cst_199 = arith.constant 0.000000e+00 : f32
    %781 = vector.broadcast %cst_199 : f32 to vector<8x1xf32>
    %782 = arith.select %35, %780, %781 : vector<8x1xi1>, vector<8x1xf32>
    %783 = arith.addf %777, %782 : vector<8x1xf32>
    %784 = vector.broadcast %770 : vector<1x1xf32> to vector<8x1xf32>
    %785 = arith.mulf %772, %784 : vector<8x1xf32>
    %cst_200 = arith.constant 0.000000e+00 : f32
    %786 = vector.broadcast %cst_200 : f32 to vector<8x1xf32>
    %787 = arith.select %31, %785, %786 : vector<8x1xi1>, vector<8x1xf32>
    %788 = arith.addf %783, %787 : vector<8x1xf32>
    %789 = arith.cmpf ogt, %772, %765 : vector<8x1xf32>
    %790 = arith.cmpf ogt, %772, %771 : vector<8x1xf32>
    %791 = arith.andi %789, %790 : vector<8x1xi1>
    %792 = arith.extui %791 : vector<8x1xi1> to vector<8x1xi32>
    %793 = arith.sitofp %792 : vector<8x1xi32> to vector<8x1xf32>
    %cst_201 = arith.constant 0.000000e+00 : f32
    %794 = vector.broadcast %cst_201 : f32 to vector<8x1xf32>
    %795 = arith.select %37, %793, %794 : vector<8x1xi1>, vector<8x1xf32>
    %cst_202 = arith.constant dense<0.000000e+00> : vector<1xf32>
    %796 = vector.multi_reduction <add>, %795, %cst_202 [0] : vector<8x1xf32> to vector<1xf32>
    %797 = vector.shape_cast %796 : vector<1xf32> to vector<1x1xf32>
    %cst_203 = arith.constant 1.000000e+00 : f32
    %798 = vector.broadcast %cst_203 : f32 to vector<1x1xf32>
    %799 = arith.subf %798, %733 : vector<1x1xf32>
    %c0_i32_204 = arith.constant 0 : i32
    %800 = arith.cmpi sgt, %c7_i32_185, %c0_i32_204 : i32
    %801 = arith.extui %800 : i1 to i32
    %802 = arith.sitofp %801 : i32 to f32
    %803 = vector.broadcast %802 : f32 to vector<1x1xf32>
    %804 = arith.mulf %799, %803 : vector<1x1xf32>
    %cst_205 = arith.constant 0.000000e+00 : f32
    %805 = vector.broadcast %cst_205 : f32 to vector<1x1xf32>
    %806 = arith.cmpf ogt, %804, %805 : vector<1x1xf32>
    %cst_206 = arith.constant 5.000000e-01 : f32
    %807 = vector.broadcast %cst_206 : f32 to vector<1x128xf32>
    %808 = arith.cmpf ogt, %725, %807 : vector<1x128xf32>
    %809 = vector.broadcast %806 : vector<1x1xi1> to vector<1x128xi1>
    %810 = arith.andi %809, %808 : vector<1x128xi1>
    %811 = vector.shape_cast %810 : vector<1x128xi1> to vector<1x128xi1>
    %812 = vector.broadcast %811 : vector<1x128xi1> to vector<8x128xi1>
    %813 = vector.shape_cast %788 : vector<8x1xf32> to vector<8x1xf32>
    %814 = vector.broadcast %813 : vector<8x1xf32> to vector<8x128xf32>
    %815 = arith.select %812, %814, %720 : vector<8x128xi1>, vector<8x128xf32>
    %c1_i32_207 = arith.constant 1 : i32
    %816 = tpu.dynamic_rotate %725 by %c1_i32_207 dim 1 : vector<1x128xf32>, i32 -> vector<1x128xf32>
    %817 = arith.subf %816, %725 : vector<1x128xf32>
    %818 = vector.broadcast %804 : vector<1x1xf32> to vector<1x128xf32>
    %819 = arith.mulf %818, %817 : vector<1x128xf32>
    %820 = arith.addf %725, %819 : vector<1x128xf32>
    %821 = arith.subf %788, %729 : vector<8x1xf32>
    %822 = vector.broadcast %804 : vector<1x1xf32> to vector<8x1xf32>
    %823 = arith.mulf %822, %821 : vector<8x1xf32>
    %824 = arith.addf %729, %823 : vector<8x1xf32>
    %825 = arith.subf %797, %732 : vector<1x1xf32>
    %826 = arith.mulf %804, %825 : vector<1x1xf32>
    %827 = arith.addf %732, %826 : vector<1x1xf32>
    %c8_i32 = arith.constant 8 : i32
    %c0_208 = arith.constant 0 : index
    %c0_209 = arith.constant 0 : index
    %828 = vector.load %arg5[%c0_208, %c0_209] : memref<8x128xf32, #tpu.memory_space<vmem>>, vector<8x128xf32>
    tpu.vector_store %arg5[%c0_208, %c0_209], %815 {strides = array<i32>} : memref<8x128xf32, #tpu.memory_space<vmem>>, vector<8x128xf32>,
    return
  }
}

</mosaic_0001>

<llo_original>
// kernel: sketch_decoder_forward.1
$region0: #{sketch_decoder_forward.1}
  #allocation0 [shape = 'u32[]', space=smem, size = 0x4, offset = 0x4, fixed_abs, tag = 'smem constant byte address 0x4 - core index']
  #allocation1 [shape = 'u32[72,128]{1,0:T(1,128)}', space=vmem, size = 0x9000, scoped, tag = 'internal scratch']
  %s0 = inlined_call_operand.vmem [shape: f32[16], index: 0, kind: input, shape index: {}]
  %s1 = inlined_call_operand.vmem [shape: f32[8,128], index: 1, kind: input, shape index: {}]
  %s2 = inlined_call_operand.vmem [shape: f32[1,128], index: 2, kind: input, shape index: {}]
  %s3 = inlined_call_operand.vmem [shape: f32[8,128], index: 3, kind: input, shape index: {}]
  %s4 = inlined_call_operand.vmem [shape: f32[8,1], index: 4, kind: input, shape index: {}]
  %s5 = inlined_call_operand.vmem [shape: f32[8,128], index: 5, kind: output, shape index: {}]
  %s6 = sld [smem:[#allocation0]]
  $region34: #{sketch_decoder_forward.1} parent=0
    _
  %s8 = ssub.s32 1, %s6
  %s9 = scalar_select 0, %s8, %s6
  $region1: #{sketch_decoder_forward.1} parent=0
    #allocation2 [shape = 'u8[512]{0}', space=smem, size = 0x200, scoped, tag = 'input window, operand 0, single buffered']
    #allocation3 [shape = 's32[1]{0}', space=sflag, size = 0x4, scoped, tag = 'scoped memory for sketch_decoder_forward.1']
    %10 = vsyncpa [#allocation3], 0
    // Predicated region
    $region2: #{sketch_decoder_forward.1} parent=1 // pred_check
      _
    $region3: #{sketch_decoder_forward.1} parent=1 // pred_check_branch
      %12 = sbr.rel (0) target = $region5
    $region4: #{sketch_decoder_forward.1} parent=1 // pred_region
      %14 = vsyncadd [#allocation3], 0
      %s16 = sshll.u32 %s0, 4
      %s17 = int_to_ptr.vmem [resolvable:$true] %s16
      %19 = dma.vmem_to_smem %s17, 16, [#allocation2], [#allocation3]
    $region5: #{sketch_decoder_forward.1} parent=1 // pred_fallthru
      _
    // Predicated region
    $region6: #{sketch_decoder_forward.1} parent=1 // pred_check
      _
    $region7: #{sketch_decoder_forward.1} parent=1 // pred_check_branch
      %21 = sbr.rel (0) target = $region9
    $region8: #{sketch_decoder_forward.1} parent=1 // pred_region
      _
    $region9: #{sketch_decoder_forward.1} parent=1 // pred_fallthru
      _
    // Predicated region
    $region10: #{sketch_decoder_forward.1} parent=1 // pred_check
      _
    $region11: #{sketch_decoder_forward.1} parent=1 // pred_check_branch
      %23 = sbr.rel (0) target = $region13
    $region12: #{sketch_decoder_forward.1} parent=1 // pred_region
      _
    $region13: #{sketch_decoder_forward.1} parent=1 // pred_fallthru
      _
    // Predicated region
    $region14: #{sketch_decoder_forward.1} parent=1 // pred_check
      _
    $region15: #{sketch_decoder_forward.1} parent=1 // pred_check_branch
      %25 = sbr.rel (0) target = $region17
    $region16: #{sketch_decoder_forward.1} parent=1 // pred_region
      _
    $region17: #{sketch_decoder_forward.1} parent=1 // pred_fallthru
      _
    // Predicated region
    $region18: #{sketch_decoder_forward.1} parent=1 // pred_check
      _
    $region19: #{sketch_decoder_forward.1} parent=1 // pred_check_branch
      %27 = sbr.rel (0) target = $region21
    $region20: #{sketch_decoder_forward.1} parent=1 // pred_region
      _
    $region21: #{sketch_decoder_forward.1} parent=1 // pred_fallthru
      _
    // Predicated region
    $region22: #{sketch_decoder_forward.1} parent=1 // pred_check
      _
    $region23: #{sketch_decoder_forward.1} parent=1 // pred_check_branch
      %29 = sbr.rel (0) target = $region25
    $region24: #{sketch_decoder_forward.1} parent=1 // pred_region
      %31 = dma.done [#allocation3], 16
    $region25: #{sketch_decoder_forward.1} parent=1 // pred_fallthru
      _
    %32 = sfence
    %v33 = vlaneseq
    %v34 = vshrl.u32 %v33, 7
    %v35 = vlaneseq
    %v36 = vand.u32 %v35, 127
    %vm37 = vcmp.eq.s32.totalorder %v34, 1
    %vm38 = vcmp.eq.s32.totalorder %v34, 3
    %vm39 = vmor %vm37, %vm38
    %vm40 = vcmp.ge.s32.totalorder %v34, 4
    %vm41 = vcmp.le.s32.totalorder %v34, 6
    %vm42 = vmand %vm40, %vm41
    %v43 = vsel %vm42, 1.0, 0.0
    %v44 = vsel %vm39, 0.5, %v43
    %vm45 = vcmp.eq.s32.totalorder %v34, 0
    %vm46 = vcmp.eq.s32.totalorder %v34, 2
    %vm47 = vmor %vm45, %vm46
    %vm48 = vcmp.ge.s32.totalorder %v34, 2
    %vm49 = vcmp.le.s32.totalorder %v34, 4
    %vm50 = vmand %vm48, %vm49
    %vm51 = vcmp.eq.s32.totalorder %v34, 4
    %v52 = vld [vmem:[%s1] sm:$0xff]
    %v53 = vld [vmem:[%s2] sm:$0x1]
    %v54 = vld [vmem:[%s3] sm:$0xff]
    %v55 = vld [vmem:[%s4] sm:$0xff]
    %v56 = vsel %vm46, 1.0, 0.0
    %v57 = vsel %vm51, 1.0, 0.0
    %vm58 = vcmp.eq.s32.totalorder %v36, 0
    %v59 = vsel %vm58, 1, 0
    %vm60 = vcmp.eq.s32.totalorder %v59, 1
    %v61 = vsel %vm60, %v56, %v57
    %vm62 = vcmp.eq.s32.totalorder %v36, 1
    %v63 = vsel %vm62, 1.0, 0.0
    %s64 = sld [smem:[#allocation2]]
    %s65 = sld [smem:[#allocation2 + $0x1]]
    %v66 = vmul.f32 %v56, %v52
    %v67 = vrot.slane %v66, 4
    %v68 = vadd.f32 %v66, %v67
    %v69 = vrot.slane %v68, 2
    %v70 = vadd.f32 %v68, %v69
    %v71 = vrot.slane %v70, 1
    %v72 = vadd.f32 %v70, %v71
    %v73 = vadd.f32 %v53, %v72
    %v74 = vxor.u32 %v73, 2147483648
    %v75 = vmul.f32 %v74, 1.442695
    %v76 = vpow.pop %v75
    %v77 = vadd.f32 %v76, 1.0
    %v78 = vrcp.pop %v77
    %v79 = vmul.f32 %v77, %v78
    %v80 = vsub.f32 1.0, %v79
    %v81 = vmul.f32 %v78, %v80
    %v82 = vadd.f32 %v78, %v81
    %vm83 = vweird.f32 %v77
    %vm84 = vweird.f32 %v78
    %vm85 = vmor %vm83, %vm84
    %v86 = vsel %vm85, %v78, %v82
    %v87 = vand.u32 2147483647, %v77
    %vm88 = vcmp.eq.f32.partialorder %v87, 8.507059e+37
    %v89 = vand.u32 %v77, 2147483648
    %v90 = vor.u32 1.1754944e-38, %v89
    %v91 = vsel %vm88, %v90, %v86
    %v92 = vmul.f32 1.0, %v91
    %v93 = vtanh.pop %v73
    %94 = vrot.lane.b32.xlu0 %v93, 64
    %v95 = vpop.permute.xlu0 %94
    %v96 = vmul.f32 %v92, %v95
    %97 = vrot.lane.b32.xlu0 %v92, 32
    %v98 = vpop.permute.xlu0 %97
    %v99 = vtanh.pop %v96
    %v100 = vmul.f32 %v98, %v99
    %v101 = vperm.slane %v100, 0
    %v102 = vmul.f32 %v101, %v54
    %103 = vadd.xlane.f32.xlu0 %v102
    %v104 = vpop.xlane.xlu0 %103
    %v105 = vadd.f32 %v104, %v55
    %v106 = vtanh.pop %v105
    %v107 = vmul.f32 %v106, %v44
    %v108 = vmul.f32 %v107, 1.442695
    %v109 = vpow.pop %v108
    %v110 = vsel %vm47, %v106, %v109
    %v111 = vsel %vm42, %v110, 0.0
    %vm112 = vcmask 7168
    %v113 = vsel %vm112, %v111, 0.0
    %v114 = vrot.slane %v113, 4
    %v115 = vadd.f32 %v113, %v114
    %v116 = vrot.slane %v115, 2
    %v117 = vadd.f32 %v115, %v116
    %v118 = vrot.slane %v117, 1
    %v119 = vadd.f32 %v117, %v118
    %v120 = vrcp.pop %v119
    %v121 = vrot.slane %v110, 1
    %v122 = vrot.slane %v110, 2
    %v123 = vstv %s64
    %v124 = vmul.f32 %v121, %v123
    %v125 = vadd.f32 %v110, %v124
    %v126 = vsel %vm45, %v125, 0.0
    %v127 = vstv %s65
    %v128 = vmul.f32 %v122, %v127
    %v129 = vadd.f32 %v121, %v128
    %v130 = vsel %vm37, %v129, 0.0
    %v131 = vadd.f32 %v126, %v130
    %v132 = vmul.f32 %v122, %v120
    %v133 = vsel %vm50, %v132, 0.0
    %v134 = vadd.f32 %v131, %v133
    %vm135 = vcmp.gt.f32.partialorder %v122, %v110
    %vm136 = vcmp.gt.f32.partialorder %v122, %v121
    %vm137 = vmand %vm135, %vm136
    %v138 = vsel %vm137, 1, 0
    %v139 = vcvt.s32.f32 %v138
    %v140 = vsel %vm51, %v139, 0.0
    %v141 = vsel %vm112, %v140, 0.0
    %v142 = vrot.slane %v141, 4
    %v143 = vadd.f32 %v141, %v142
    %v144 = vrot.slane %v143, 2
    %v145 = vadd.f32 %v143, %v144
    %v146 = vrot.slane %v145, 1
    %v147 = vadd.f32 %v145, %v146
    %vm148 = vcmp.gt.f32.partialorder 0.0, 0.0
    %vm149 = vcmp.gt.f32.partialorder %v63, 0.5
    %v150 = vsel %vm148, 1, 0
    %vm151 = vcmp.eq.s32.totalorder %v150, 1
    %vm152 = vmand %vm151, %vm149
    %v153 = vsel %vm152, 1, 0
    %vm154 = vcmp.eq.s32.totalorder %v153, 1
    %156 = vset.pattern.permute.xlu0 0
    %157 = vperm.xlu0 %156, %v134
    %v158 = vpop.permute.xlu0 %157
    %v160 = vsel %vm154, %v158, %v61
    %161 = vrot.lane.b32.xlu0 %v63, 1
    %v162 = vpop.permute.xlu0 %161
    %v163 = vsub.f32 %v162, %v63
    %v164 = vmul.f32 %v163, 0.0
    %v165 = vadd.f32 %v63, %v164
    %v166 = vsub.f32 %v134, %v56
    %v167 = vmul.f32 %v166, 0.0
    %v168 = vadd.f32 %v56, %v167
    %v169 = vmul.f32 %v147, 0.0
    %v170 = vadd.f32 %v169, 0.0
    %v171 = vmax.f32 %v170, 0.0
    %s172 = sld [smem:[#allocation2 + $0x2]]
    %s173 = sld [smem:[#allocation2 + $0x3]]
    %175 = vset.pattern.permute.xlu0 0
    %176 = vperm.xlu0 %175, %v168
    %v177 = vpop.permute.xlu0 %176
    %v179 = vmul.f32 %v177, %v52
    %v180 = vrot.slane %v179, 4
    %v181 = vadd.f32 %v179, %v180
    %v182 = vrot.slane %v181, 2
    %v183 = vadd.f32 %v181, %v182
    %v184 = vrot.slane %v183, 1
    %v185 = vadd.f32 %v183, %v184
    %v186 = vadd.f32 %v53, %v185
    %v187 = vxor.u32 %v186, 2147483648
    %v188 = vmul.f32 %v187, 1.442695
    %v189 = vpow.pop %v188
    %v190 = vadd.f32 %v189, 1.0
    %v191 = vrcp.pop %v190
    %v192 = vmul.f32 %v190, %v191
    %v193 = vsub.f32 1.0, %v192
    %v194 = vmul.f32 %v191, %v193
    %v195 = vadd.f32 %v191, %v194
    %vm196 = vweird.f32 %v190
    %vm197 = vweird.f32 %v191
    %vm198 = vmor %vm196, %vm197
    %v199 = vsel %vm198, %v191, %v195
    %v200 = vand.u32 2147483647, %v190
    %vm201 = vcmp.eq.f32.partialorder %v200, 8.507059e+37
    %v202 = vand.u32 %v190, 2147483648
    %v203 = vor.u32 1.1754944e-38, %v202
    %v204 = vsel %vm201, %v203, %v199
    %v205 = vmul.f32 1.0, %v204
    %v206 = vtanh.pop %v186
    %207 = vrot.lane.b32.xlu0 %v206, 64
    %v208 = vpop.permute.xlu0 %207
    %v209 = vmul.f32 %v205, %v208
    %210 = vrot.lane.b32.xlu0 %v205, 32
    %v211 = vpop.permute.xlu0 %210
    %v212 = vtanh.pop %v209
    %v213 = vmul.f32 %v211, %v212
    %v214 = vperm.slane %v213, 0
    %v215 = vmul.f32 %v214, %v54
    %216 = vadd.xlane.f32.xlu0 %v215
    %v217 = vpop.xlane.xlu0 %216
    %v218 = vadd.f32 %v217, %v55
    %v219 = vtanh.pop %v218
    %v220 = vmul.f32 %v219, %v44
    %v221 = vmul.f32 %v220, 1.442695
    %v222 = vpow.pop %v221
    %v223 = vsel %vm47, %v219, %v222
    %v224 = vsel %vm42, %v223, 0.0
    %v225 = vsel %vm112, %v224, 0.0
    %v226 = vrot.slane %v225, 4
    %v227 = vadd.f32 %v225, %v226
    %v228 = vrot.slane %v227, 2
    %v229 = vadd.f32 %v227, %v228
    %v230 = vrot.slane %v229, 1
    %v231 = vadd.f32 %v229, %v230
    %v232 = vrcp.pop %v231
    %v233 = vrot.slane %v223, 1
    %v234 = vrot.slane %v223, 2
    %v235 = vstv %s172
    %v236 = vmul.f32 %v233, %v235
    %v237 = vadd.f32 %v223, %v236
    %v238 = vsel %vm45, %v237, 0.0
    %v239 = vstv %s173
    %v240 = vmul.f32 %v234, %v239
    %v241 = vadd.f32 %v233, %v240
    %v242 = vsel %vm37, %v241, 0.0
    %v243 = vadd.f32 %v238, %v242
    %v244 = vmul.f32 %v234, %v232
    %v245 = vsel %vm50, %v244, 0.0
    %v246 = vadd.f32 %v243, %v245
    %vm247 = vcmp.gt.f32.partialorder %v234, %v223
    %vm248 = vcmp.gt.f32.partialorder %v234, %v233
    %vm249 = vmand %vm247, %vm248
    %v250 = vsel %vm249, 1, 0
    %v251 = vcvt.s32.f32 %v250
    %v252 = vsel %vm51, %v251, 0.0
    %v253 = vsel %vm112, %v252, 0.0
    %v254 = vrot.slane %v253, 4
    %v255 = vadd.f32 %v253, %v254
    %v256 = vrot.slane %v255, 2
    %v257 = vadd.f32 %v255, %v256
    %v258 = vrot.slane %v257, 1
    %v259 = vadd.f32 %v257, %v258
    %v260 = vsub.f32 1.0, %v171
    %vm261 = vcmp.gt.f32.partialorder %v260, 0.0
    %vm262 = vcmp.gt.f32.partialorder %v165, 0.5
    %v263 = vsel %vm261, 1, 0
    %264 = vset.pattern.permute.xlu0 0
    %265 = vperm.xlu0 %264, %v263
    %v266 = vpop.permute.xlu0 %265
    %vm267 = vcmp.eq.s32.totalorder %v266, 1
    %vm268 = vmand %vm267, %vm262
    %v269 = vsel %vm268, 1, 0
    %v270 = vperm.slane %v269, 0
    %vm271 = vcmp.eq.s32.totalorder %v270, 1
    %273 = vset.pattern.permute.xlu0 0
    %274 = vperm.xlu0 %273, %v246
    %v275 = vpop.permute.xlu0 %274
    %v277 = vsel %vm271, %v275, %v160
    %278 = vrot.lane.b32.xlu0 %v165, 1
    %v279 = vpop.permute.xlu0 %278
    %v280 = vsub.f32 %v279, %v165
    %282 = vset.pattern.permute.xlu0 0
    %283 = vperm.xlu0 %282, %v260
    %v284 = vpop.permute.xlu0 %283
    %v286 = vmul.f32 %v284, %v280
    %v287 = vadd.f32 %v165, %v286
    %v288 = vsub.f32 %v246, %v168
    %v289 = vmul.f32 %v260, %v288
    %v290 = vadd.f32 %v168, %v289
    %v291 = vsub.f32 %v259, %v170
    %v292 = vmul.f32 %v260, %v291
    %v293 = vadd.f32 %v170, %v292
    %v294 = vmax.f32 %v171, %v293
    %s295 = sld [smem:[#allocation2 + $0x4]]
    %s296 = sld [smem:[#allocation2 + $0x5]]
    %298 = vset.pattern.permute.xlu0 0
    %299 = vperm.xlu0 %298, %v290
    %v300 = vpop.permute.xlu0 %299
    %v302 = vmul.f32 %v300, %v52
    %v303 = vrot.slane %v302, 4
    %v304 = vadd.f32 %v302, %v303
    %v305 = vrot.slane %v304, 2
    %v306 = vadd.f32 %v304, %v305
    %v307 = vrot.slane %v306, 1
    %v308 = vadd.f32 %v306, %v307
    %v309 = vadd.f32 %v53, %v308
    %v310 = vxor.u32 %v309, 2147483648
    %v311 = vmul.f32 %v310, 1.442695
    %v312 = vpow.pop %v311
    %v313 = vadd.f32 %v312, 1.0
    %v314 = vrcp.pop %v313
    %v315 = vmul.f32 %v313, %v314
    %v316 = vsub.f32 1.0, %v315
    %v317 = vmul.f32 %v314, %v316
    %v318 = vadd.f32 %v314, %v317
    %vm319 = vweird.f32 %v313
    %vm320 = vweird.f32 %v314
    %vm321 = vmor %vm319, %vm320
    %v322 = vsel %vm321, %v314, %v318
    %v323 = vand.u32 2147483647, %v313
    %vm324 = vcmp.eq.f32.partialorder %v323, 8.507059e+37
    %v325 = vand.u32 %v313, 2147483648
    %v326 = vor.u32 1.1754944e-38, %v325
    %v327 = vsel %vm324, %v326, %v322
    %v328 = vmul.f32 1.0, %v327
    %v329 = vtanh.pop %v309
    %330 = vrot.lane.b32.xlu0 %v329, 64
    %v331 = vpop.permute.xlu0 %330
    %v332 = vmul.f32 %v328, %v331
    %333 = vrot.lane.b32.xlu0 %v328, 32
    %v334 = vpop.permute.xlu0 %333
    %v335 = vtanh.pop %v332
    %v336 = vmul.f32 %v334, %v335
    %v337 = vperm.slane %v336, 0
    %v338 = vmul.f32 %v337, %v54
    %339 = vadd.xlane.f32.xlu0 %v338
    %v340 = vpop.xlane.xlu0 %339
    %v341 = vadd.f32 %v340, %v55
    %v342 = vtanh.pop %v341
    %v343 = vmul.f32 %v342, %v44
    %v344 = vmul.f32 %v343, 1.442695
    %v345 = vpow.pop %v344
    %v346 = vsel %vm47, %v342, %v345
    %v347 = vsel %vm42, %v346, 0.0
    %v348 = vsel %vm112, %v347, 0.0
    %v349 = vrot.slane %v348, 4
    %v350 = vadd.f32 %v348, %v349
    %v351 = vrot.slane %v350, 2
    %v352 = vadd.f32 %v350, %v351
    %v353 = vrot.slane %v352, 1
    %v354 = vadd.f32 %v352, %v353
    %v355 = vrcp.pop %v354
    %v356 = vrot.slane %v346, 1
    %v357 = vrot.slane %v346, 2
    %v358 = vstv %s295
    %v359 = vmul.f32 %v356, %v358
    %v360 = vadd.f32 %v346, %v359
    %v361 = vsel %vm45, %v360, 0.0
    %v362 = vstv %s296
    %v363 = vmul.f32 %v357, %v362
    %v364 = vadd.f32 %v356, %v363
    %v365 = vsel %vm37, %v364, 0.0
    %v366 = vadd.f32 %v361, %v365
    %v367 = vmul.f32 %v357, %v355
    %v368 = vsel %vm50, %v367, 0.0
    %v369 = vadd.f32 %v366, %v368
    %vm370 = vcmp.gt.f32.partialorder %v357, %v346
    %vm371 = vcmp.gt.f32.partialorder %v357, %v356
    %vm372 = vmand %vm370, %vm371
    %v373 = vsel %vm372, 1, 0
    %v374 = vcvt.s32.f32 %v373
    %v375 = vsel %vm51, %v374, 0.0
    %v376 = vsel %vm112, %v375, 0.0
    %v377 = vrot.slane %v376, 4
    %v378 = vadd.f32 %v376, %v377
    %v379 = vrot.slane %v378, 2
    %v380 = vadd.f32 %v378, %v379
    %v381 = vrot.slane %v380, 1
    %v382 = vadd.f32 %v380, %v381
    %v383 = vsub.f32 1.0, %v294
    %vm384 = vcmp.gt.f32.partialorder %v383, 0.0
    %vm385 = vcmp.gt.f32.partialorder %v287, 0.5
    %v386 = vsel %vm384, 1, 0
    %387 = vset.pattern.permute.xlu0 0
    %388 = vperm.xlu0 %387, %v386
    %v389 = vpop.permute.xlu0 %388
    %vm390 = vcmp.eq.s32.totalorder %v389, 1
    %vm391 = vmand %vm390, %vm385
    %v392 = vsel %vm391, 1, 0
    %v393 = vperm.slane %v392, 0
    %vm394 = vcmp.eq.s32.totalorder %v393, 1
    %396 = vset.pattern.permute.xlu0 0
    %397 = vperm.xlu0 %396, %v369
    %v398 = vpop.permute.xlu0 %397
    %v400 = vsel %vm394, %v398, %v277
    %401 = vrot.lane.b32.xlu0 %v287, 1
    %v402 = vpop.permute.xlu0 %401
    %v403 = vsub.f32 %v402, %v287
    %405 = vset.pattern.permute.xlu0 0
    %406 = vperm.xlu0 %405, %v383
    %v407 = vpop.permute.xlu0 %406
    %v409 = vmul.f32 %v407, %v403
    %v410 = vadd.f32 %v287, %v409
    %v411 = vsub.f32 %v369, %v290
    %v412 = vmul.f32 %v383, %v411
    %v413 = vadd.f32 %v290, %v412
    %v414 = vsub.f32 %v382, %v293
    %v415 = vmul.f32 %v383, %v414
    %v416 = vadd.f32 %v293, %v415
    %v417 = vmax.f32 %v294, %v416
    %s418 = sld [smem:[#allocation2 + $0x6]]
    %s419 = sld [smem:[#allocation2 + $0x7]]
    %421 = vset.pattern.permute.xlu0 0
    %422 = vperm.xlu0 %421, %v413
    %v423 = vpop.permute.xlu0 %422
    %v425 = vmul.f32 %v423, %v52
    %v426 = vrot.slane %v425, 4
    %v427 = vadd.f32 %v425, %v426
    %v428 = vrot.slane %v427, 2
    %v429 = vadd.f32 %v427, %v428
    %v430 = vrot.slane %v429, 1
    %v431 = vadd.f32 %v429, %v430
    %v432 = vadd.f32 %v53, %v431
    %v433 = vxor.u32 %v432, 2147483648
    %v434 = vmul.f32 %v433, 1.442695
    %v435 = vpow.pop %v434
    %v436 = vadd.f32 %v435, 1.0
    %v437 = vrcp.pop %v436
    %v438 = vmul.f32 %v436, %v437
    %v439 = vsub.f32 1.0, %v438
    %v440 = vmul.f32 %v437, %v439
    %v441 = vadd.f32 %v437, %v440
    %vm442 = vweird.f32 %v436
    %vm443 = vweird.f32 %v437
    %vm444 = vmor %vm442, %vm443
    %v445 = vsel %vm444, %v437, %v441
    %v446 = vand.u32 2147483647, %v436
    %vm447 = vcmp.eq.f32.partialorder %v446, 8.507059e+37
    %v448 = vand.u32 %v436, 2147483648
    %v449 = vor.u32 1.1754944e-38, %v448
    %v450 = vsel %vm447, %v449, %v445
    %v451 = vmul.f32 1.0, %v450
    %v452 = vtanh.pop %v432
    %453 = vrot.lane.b32.xlu0 %v452, 64
    %v454 = vpop.permute.xlu0 %453
    %v455 = vmul.f32 %v451, %v454
    %456 = vrot.lane.b32.xlu0 %v451, 32
    %v457 = vpop.permute.xlu0 %456
    %v458 = vtanh.pop %v455
    %v459 = vmul.f32 %v457, %v458
    %v460 = vperm.slane %v459, 0
    %v461 = vmul.f32 %v460, %v54
    %462 = vadd.xlane.f32.xlu0 %v461
    %v463 = vpop.xlane.xlu0 %462
    %v464 = vadd.f32 %v463, %v55
    %v465 = vtanh.pop %v464
    %v466 = vmul.f32 %v465, %v44
    %v467 = vmul.f32 %v466, 1.442695
    %v468 = vpow.pop %v467
    %v469 = vsel %vm47, %v465, %v468
    %v470 = vsel %vm42, %v469, 0.0
    %v471 = vsel %vm112, %v470, 0.0
    %v472 = vrot.slane %v471, 4
    %v473 = vadd.f32 %v471, %v472
    %v474 = vrot.slane %v473, 2
    %v475 = vadd.f32 %v473, %v474
    %v476 = vrot.slane %v475, 1
    %v477 = vadd.f32 %v475, %v476
    %v478 = vrcp.pop %v477
    %v479 = vrot.slane %v469, 1
    %v480 = vrot.slane %v469, 2
    %v481 = vstv %s418
    %v482 = vmul.f32 %v479, %v481
    %v483 = vadd.f32 %v469, %v482
    %v484 = vsel %vm45, %v483, 0.0
    %v485 = vstv %s419
    %v486 = vmul.f32 %v480, %v485
    %v487 = vadd.f32 %v479, %v486
    %v488 = vsel %vm37, %v487, 0.0
    %v489 = vadd.f32 %v484, %v488
    %v490 = vmul.f32 %v480, %v478
    %v491 = vsel %vm50, %v490, 0.0
    %v492 = vadd.f32 %v489, %v491
    %vm493 = vcmp.gt.f32.partialorder %v480, %v469
    %vm494 = vcmp.gt.f32.partialorder %v480, %v479
    %vm495 = vmand %vm493, %vm494
    %v496 = vsel %vm495, 1, 0
    %v497 = vcvt.s32.f32 %v496
    %v498 = vsel %vm51, %v497, 0.0
    %v499 = vsel %vm112, %v498, 0.0
    %v500 = vrot.slane %v499, 4
    %v501 = vadd.f32 %v499, %v500
    %v502 = vrot.slane %v501, 2
    %v503 = vadd.f32 %v501, %v502
    %v504 = vrot.slane %v503, 1
    %v505 = vadd.f32 %v503, %v504
    %v506 = vsub.f32 1.0, %v417
    %vm507 = vcmp.gt.f32.partialorder %v506, 0.0
    %vm508 = vcmp.gt.f32.partialorder %v410, 0.5
    %v509 = vsel %vm507, 1, 0
    %510 = vset.pattern.permute.xlu0 0
    %511 = vperm.xlu0 %510, %v509
    %v512 = vpop.permute.xlu0 %511
    %vm513 = vcmp.eq.s32.totalorder %v512, 1
    %vm514 = vmand %vm513, %vm508
    %v515 = vsel %vm514, 1, 0
    %v516 = vperm.slane %v515, 0
    %vm517 = vcmp.eq.s32.totalorder %v516, 1
    %519 = vset.pattern.permute.xlu0 0
    %520 = vperm.xlu0 %519, %v492
    %v521 = vpop.permute.xlu0 %520
    %v523 = vsel %vm517, %v521, %v400
    %524 = vrot.lane.b32.xlu0 %v410, 1
    %v525 = vpop.permute.xlu0 %524
    %v526 = vsub.f32 %v525, %v410
    %528 = vset.pattern.permute.xlu0 0
    %529 = vperm.xlu0 %528, %v506
    %v530 = vpop.permute.xlu0 %529
    %v532 = vmul.f32 %v530, %v526
    %v533 = vadd.f32 %v410, %v532
    %v534 = vsub.f32 %v492, %v413
    %v535 = vmul.f32 %v506, %v534
    %v536 = vadd.f32 %v413, %v535
    %v537 = vsub.f32 %v505, %v416
    %v538 = vmul.f32 %v506, %v537
    %v539 = vadd.f32 %v416, %v538
    %v540 = vmax.f32 %v417, %v539
    %s541 = sld [smem:[#allocation2 + $0x8]]
    %s542 = sld [smem:[#allocation2 + $0x9]]
    %544 = vset.pattern.permute.xlu0 0
    %545 = vperm.xlu0 %544, %v536
    %v546 = vpop.permute.xlu0 %545
    %v548 = vmul.f32 %v546, %v52
    %v549 = vrot.slane %v548, 4
    %v550 = vadd.f32 %v548, %v549
    %v551 = vrot.slane %v550, 2
    %v552 = vadd.f32 %v550, %v551
    %v553 = vrot.slane %v552, 1
    %v554 = vadd.f32 %v552, %v553
    %v555 = vadd.f32 %v53, %v554
    %v556 = vxor.u32 %v555, 2147483648
    %v557 = vmul.f32 %v556, 1.442695
    %v558 = vpow.pop %v557
    %v559 = vadd.f32 %v558, 1.0
    %v560 = vrcp.pop %v559
    %v561 = vmul.f32 %v559, %v560
    %v562 = vsub.f32 1.0, %v561
    %v563 = vmul.f32 %v560, %v562
    %v564 = vadd.f32 %v560, %v563
    %vm565 = vweird.f32 %v559
    %vm566 = vweird.f32 %v560
    %vm567 = vmor %vm565, %vm566
    %v568 = vsel %vm567, %v560, %v564
    %v569 = vand.u32 2147483647, %v559
    %vm570 = vcmp.eq.f32.partialorder %v569, 8.507059e+37
    %v571 = vand.u32 %v559, 2147483648
    %v572 = vor.u32 1.1754944e-38, %v571
    %v573 = vsel %vm570, %v572, %v568
    %v574 = vmul.f32 1.0, %v573
    %v575 = vtanh.pop %v555
    %576 = vrot.lane.b32.xlu0 %v575, 64
    %v577 = vpop.permute.xlu0 %576
    %v578 = vmul.f32 %v574, %v577
    %579 = vrot.lane.b32.xlu0 %v574, 32
    %v580 = vpop.permute.xlu0 %579
    %v581 = vtanh.pop %v578
    %v582 = vmul.f32 %v580, %v581
    %v583 = vperm.slane %v582, 0
    %v584 = vmul.f32 %v583, %v54
    %585 = vadd.xlane.f32.xlu0 %v584
    %v586 = vpop.xlane.xlu0 %585
    %v587 = vadd.f32 %v586, %v55
    %v588 = vtanh.pop %v587
    %v589 = vmul.f32 %v588, %v44
    %v590 = vmul.f32 %v589, 1.442695
    %v591 = vpow.pop %v590
    %v592 = vsel %vm47, %v588, %v591
    %v593 = vsel %vm42, %v592, 0.0
    %v594 = vsel %vm112, %v593, 0.0
    %v595 = vrot.slane %v594, 4
    %v596 = vadd.f32 %v594, %v595
    %v597 = vrot.slane %v596, 2
    %v598 = vadd.f32 %v596, %v597
    %v599 = vrot.slane %v598, 1
    %v600 = vadd.f32 %v598, %v599
    %v601 = vrcp.pop %v600
    %v602 = vrot.slane %v592, 1
    %v603 = vrot.slane %v592, 2
    %v604 = vstv %s541
    %v605 = vmul.f32 %v602, %v604
    %v606 = vadd.f32 %v592, %v605
    %v607 = vsel %vm45, %v606, 0.0
    %v608 = vstv %s542
    %v609 = vmul.f32 %v603, %v608
    %v610 = vadd.f32 %v602, %v609
    %v611 = vsel %vm37, %v610, 0.0
    %v612 = vadd.f32 %v607, %v611
    %v613 = vmul.f32 %v603, %v601
    %v614 = vsel %vm50, %v613, 0.0
    %v615 = vadd.f32 %v612, %v614
    %vm616 = vcmp.gt.f32.partialorder %v603, %v592
    %vm617 = vcmp.gt.f32.partialorder %v603, %v602
    %vm618 = vmand %vm616, %vm617
    %v619 = vsel %vm618, 1, 0
    %v620 = vcvt.s32.f32 %v619
    %v621 = vsel %vm51, %v620, 0.0
    %v622 = vsel %vm112, %v621, 0.0
    %v623 = vrot.slane %v622, 4
    %v624 = vadd.f32 %v622, %v623
    %v625 = vrot.slane %v624, 2
    %v626 = vadd.f32 %v624, %v625
    %v627 = vrot.slane %v626, 1
    %v628 = vadd.f32 %v626, %v627
    %v629 = vsub.f32 1.0, %v540
    %vm630 = vcmp.gt.f32.partialorder %v629, 0.0
    %vm631 = vcmp.gt.f32.partialorder %v533, 0.5
    %v632 = vsel %vm630, 1, 0
    %633 = vset.pattern.permute.xlu0 0
    %634 = vperm.xlu0 %633, %v632
    %v635 = vpop.permute.xlu0 %634
    %vm636 = vcmp.eq.s32.totalorder %v635, 1
    %vm637 = vmand %vm636, %vm631
    %v638 = vsel %vm637, 1, 0
    %v639 = vperm.slane %v638, 0
    %vm640 = vcmp.eq.s32.totalorder %v639, 1
    %642 = vset.pattern.permute.xlu0 0
    %643 = vperm.xlu0 %642, %v615
    %v644 = vpop.permute.xlu0 %643
    %v646 = vsel %vm640, %v644, %v523
    %647 = vrot.lane.b32.xlu0 %v533, 1
    %v648 = vpop.permute.xlu0 %647
    %v649 = vsub.f32 %v648, %v533
    %651 = vset.pattern.permute.xlu0 0
    %652 = vperm.xlu0 %651, %v629
    %v653 = vpop.permute.xlu0 %652
    %v655 = vmul.f32 %v653, %v649
    %v656 = vadd.f32 %v533, %v655
    %v657 = vsub.f32 %v615, %v536
    %v658 = vmul.f32 %v629, %v657
    %v659 = vadd.f32 %v536, %v658
    %v660 = vsub.f32 %v628, %v539
    %v661 = vmul.f32 %v629, %v660
    %v662 = vadd.f32 %v539, %v661
    %v663 = vmax.f32 %v540, %v662
    %s664 = sld [smem:[#allocation2 + $0xa]]
    %s665 = sld [smem:[#allocation2 + $0xb]]
    %667 = vset.pattern.permute.xlu0 0
    %668 = vperm.xlu0 %667, %v659
    %v669 = vpop.permute.xlu0 %668
    %v671 = vmul.f32 %v669, %v52
    %v672 = vrot.slane %v671, 4
    %v673 = vadd.f32 %v671, %v672
    %v674 = vrot.slane %v673, 2
    %v675 = vadd.f32 %v673, %v674
    %v676 = vrot.slane %v675, 1
    %v677 = vadd.f32 %v675, %v676
    %v678 = vadd.f32 %v53, %v677
    %v679 = vxor.u32 %v678, 2147483648
    %v680 = vmul.f32 %v679, 1.442695
    %v681 = vpow.pop %v680
    %v682 = vadd.f32 %v681, 1.0
    %v683 = vrcp.pop %v682
    %v684 = vmul.f32 %v682, %v683
    %v685 = vsub.f32 1.0, %v684
    %v686 = vmul.f32 %v683, %v685
    %v687 = vadd.f32 %v683, %v686
    %vm688 = vweird.f32 %v682
    %vm689 = vweird.f32 %v683
    %vm690 = vmor %vm688, %vm689
    %v691 = vsel %vm690, %v683, %v687
    %v692 = vand.u32 2147483647, %v682
    %vm693 = vcmp.eq.f32.partialorder %v692, 8.507059e+37
    %v694 = vand.u32 %v682, 2147483648
    %v695 = vor.u32 1.1754944e-38, %v694
    %v696 = vsel %vm693, %v695, %v691
    %v697 = vmul.f32 1.0, %v696
    %v698 = vtanh.pop %v678
    %699 = vrot.lane.b32.xlu0 %v698, 64
    %v700 = vpop.permute.xlu0 %699
    %v701 = vmul.f32 %v697, %v700
    %702 = vrot.lane.b32.xlu0 %v697, 32
    %v703 = vpop.permute.xlu0 %702
    %v704 = vtanh.pop %v701
    %v705 = vmul.f32 %v703, %v704
    %v706 = vperm.slane %v705, 0
    %v707 = vmul.f32 %v706, %v54
    %708 = vadd.xlane.f32.xlu0 %v707
    %v709 = vpop.xlane.xlu0 %708
    %v710 = vadd.f32 %v709, %v55
    %v711 = vtanh.pop %v710
    %v712 = vmul.f32 %v711, %v44
    %v713 = vmul.f32 %v712, 1.442695
    %v714 = vpow.pop %v713
    %v715 = vsel %vm47, %v711, %v714
    %v716 = vsel %vm42, %v715, 0.0
    %v717 = vsel %vm112, %v716, 0.0
    %v718 = vrot.slane %v717, 4
    %v719 = vadd.f32 %v717, %v718
    %v720 = vrot.slane %v719, 2
    %v721 = vadd.f32 %v719, %v720
    %v722 = vrot.slane %v721, 1
    %v723 = vadd.f32 %v721, %v722
    %v724 = vrcp.pop %v723
    %v725 = vrot.slane %v715, 1
    %v726 = vrot.slane %v715, 2
    %v727 = vstv %s664
    %v728 = vmul.f32 %v725, %v727
    %v729 = vadd.f32 %v715, %v728
    %v730 = vsel %vm45, %v729, 0.0
    %v731 = vstv %s665
    %v732 = vmul.f32 %v726, %v731
    %v733 = vadd.f32 %v725, %v732
    %v734 = vsel %vm37, %v733, 0.0
    %v735 = vadd.f32 %v730, %v734
    %v736 = vmul.f32 %v726, %v724
    %v737 = vsel %vm50, %v736, 0.0
    %v738 = vadd.f32 %v735, %v737
    %vm739 = vcmp.gt.f32.partialorder %v726, %v715
    %vm740 = vcmp.gt.f32.partialorder %v726, %v725
    %vm741 = vmand %vm739, %vm740
    %v742 = vsel %vm741, 1, 0
    %v743 = vcvt.s32.f32 %v742
    %v744 = vsel %vm51, %v743, 0.0
    %v745 = vsel %vm112, %v744, 0.0
    %v746 = vrot.slane %v745, 4
    %v747 = vadd.f32 %v745, %v746
    %v748 = vrot.slane %v747, 2
    %v749 = vadd.f32 %v747, %v748
    %v750 = vrot.slane %v749, 1
    %v751 = vadd.f32 %v749, %v750
    %v752 = vsub.f32 1.0, %v663
    %vm753 = vcmp.gt.f32.partialorder %v752, 0.0
    %vm754 = vcmp.gt.f32.partialorder %v656, 0.5
    %v755 = vsel %vm753, 1, 0
    %756 = vset.pattern.permute.xlu0 0
    %757 = vperm.xlu0 %756, %v755
    %v758 = vpop.permute.xlu0 %757
    %vm759 = vcmp.eq.s32.totalorder %v758, 1
    %vm760 = vmand %vm759, %vm754
    %v761 = vsel %vm760, 1, 0
    %v762 = vperm.slane %v761, 0
    %vm763 = vcmp.eq.s32.totalorder %v762, 1
    %765 = vset.pattern.permute.xlu0 0
    %766 = vperm.xlu0 %765, %v738
    %v767 = vpop.permute.xlu0 %766
    %v769 = vsel %vm763, %v767, %v646
    %770 = vrot.lane.b32.xlu0 %v656, 1
    %v771 = vpop.permute.xlu0 %770
    %v772 = vsub.f32 %v771, %v656
    %774 = vset.pattern.permute.xlu0 0
    %775 = vperm.xlu0 %774, %v752
    %v776 = vpop.permute.xlu0 %775
    %v778 = vmul.f32 %v776, %v772
    %v779 = vadd.f32 %v656, %v778
    %v780 = vsub.f32 %v738, %v659
    %v781 = vmul.f32 %v752, %v780
    %v782 = vadd.f32 %v659, %v781
    %v783 = vsub.f32 %v751, %v662
    %v784 = vmul.f32 %v752, %v783
    %v785 = vadd.f32 %v662, %v784
    %v786 = vmax.f32 %v663, %v785
    %s787 = sld [smem:[#allocation2 + $0xc]]
    %s788 = sld [smem:[#allocation2 + $0xd]]
    %790 = vset.pattern.permute.xlu0 0
    %791 = vperm.xlu0 %790, %v782
    %v792 = vpop.permute.xlu0 %791
    %v794 = vmul.f32 %v792, %v52
    %v795 = vrot.slane %v794, 4
    %v796 = vadd.f32 %v794, %v795
    %v797 = vrot.slane %v796, 2
    %v798 = vadd.f32 %v796, %v797
    %v799 = vrot.slane %v798, 1
    %v800 = vadd.f32 %v798, %v799
    %v801 = vadd.f32 %v53, %v800
    %v802 = vxor.u32 %v801, 2147483648
    %v803 = vmul.f32 %v802, 1.442695
    %v804 = vpow.pop %v803
    %v805 = vadd.f32 %v804, 1.0
    %v806 = vrcp.pop %v805
    %v807 = vmul.f32 %v805, %v806
    %v808 = vsub.f32 1.0, %v807
    %v809 = vmul.f32 %v806, %v808
    %v810 = vadd.f32 %v806, %v809
    %vm811 = vweird.f32 %v805
    %vm812 = vweird.f32 %v806
    %vm813 = vmor %vm811, %vm812
    %v814 = vsel %vm813, %v806, %v810
    %v815 = vand.u32 2147483647, %v805
    %vm816 = vcmp.eq.f32.partialorder %v815, 8.507059e+37
    %v817 = vand.u32 %v805, 2147483648
    %v818 = vor.u32 1.1754944e-38, %v817
    %v819 = vsel %vm816, %v818, %v814
    %v820 = vmul.f32 1.0, %v819
    %v821 = vtanh.pop %v801
    %822 = vrot.lane.b32.xlu0 %v821, 64
    %v823 = vpop.permute.xlu0 %822
    %v824 = vmul.f32 %v820, %v823
    %825 = vrot.lane.b32.xlu0 %v820, 32
    %v826 = vpop.permute.xlu0 %825
    %v827 = vtanh.pop %v824
    %v828 = vmul.f32 %v826, %v827
    %v829 = vperm.slane %v828, 0
    %v830 = vmul.f32 %v829, %v54
    %831 = vadd.xlane.f32.xlu0 %v830
    %v832 = vpop.xlane.xlu0 %831
    %v833 = vadd.f32 %v832, %v55
    %v834 = vtanh.pop %v833
    %v835 = vmul.f32 %v834, %v44
    %v836 = vmul.f32 %v835, 1.442695
    %v837 = vpow.pop %v836
    %v838 = vsel %vm47, %v834, %v837
    %v839 = vsel %vm42, %v838, 0.0
    %v840 = vsel %vm112, %v839, 0.0
    %v841 = vrot.slane %v840, 4
    %v842 = vadd.f32 %v840, %v841
    %v843 = vrot.slane %v842, 2
    %v844 = vadd.f32 %v842, %v843
    %v845 = vrot.slane %v844, 1
    %v846 = vadd.f32 %v844, %v845
    %v847 = vrcp.pop %v846
    %v848 = vrot.slane %v838, 1
    %v849 = vrot.slane %v838, 2
    %v850 = vstv %s787
    %v851 = vmul.f32 %v848, %v850
    %v852 = vadd.f32 %v838, %v851
    %v853 = vsel %vm45, %v852, 0.0
    %v854 = vstv %s788
    %v855 = vmul.f32 %v849, %v854
    %v856 = vadd.f32 %v848, %v855
    %v857 = vsel %vm37, %v856, 0.0
    %v858 = vadd.f32 %v853, %v857
    %v859 = vmul.f32 %v849, %v847
    %v860 = vsel %vm50, %v859, 0.0
    %v861 = vadd.f32 %v858, %v860
    %vm862 = vcmp.gt.f32.partialorder %v849, %v838
    %vm863 = vcmp.gt.f32.partialorder %v849, %v848
    %vm864 = vmand %vm862, %vm863
    %v865 = vsel %vm864, 1, 0
    %v866 = vcvt.s32.f32 %v865
    %v867 = vsel %vm51, %v866, 0.0
    %v868 = vsel %vm112, %v867, 0.0
    %v869 = vrot.slane %v868, 4
    %v870 = vadd.f32 %v868, %v869
    %v871 = vrot.slane %v870, 2
    %v872 = vadd.f32 %v870, %v871
    %v873 = vrot.slane %v872, 1
    %v874 = vadd.f32 %v872, %v873
    %v875 = vsub.f32 1.0, %v786
    %vm876 = vcmp.gt.f32.partialorder %v875, 0.0
    %vm877 = vcmp.gt.f32.partialorder %v779, 0.5
    %v878 = vsel %vm876, 1, 0
    %879 = vset.pattern.permute.xlu0 0
    %880 = vperm.xlu0 %879, %v878
    %v881 = vpop.permute.xlu0 %880
    %vm882 = vcmp.eq.s32.totalorder %v881, 1
    %vm883 = vmand %vm882, %vm877
    %v884 = vsel %vm883, 1, 0
    %v885 = vperm.slane %v884, 0
    %vm886 = vcmp.eq.s32.totalorder %v885, 1
    %888 = vset.pattern.permute.xlu0 0
    %889 = vperm.xlu0 %888, %v861
    %v890 = vpop.permute.xlu0 %889
    %v892 = vsel %vm886, %v890, %v769
    %893 = vrot.lane.b32.xlu0 %v779, 1
    %v894 = vpop.permute.xlu0 %893
    %v895 = vsub.f32 %v894, %v779
    %897 = vset.pattern.permute.xlu0 0
    %898 = vperm.xlu0 %897, %v875
    %v899 = vpop.permute.xlu0 %898
    %v901 = vmul.f32 %v899, %v895
    %v902 = vadd.f32 %v779, %v901
    %v903 = vsub.f32 %v861, %v782
    %v904 = vmul.f32 %v875, %v903
    %v905 = vadd.f32 %v782, %v904
    %v906 = vsub.f32 %v874, %v785
    %v907 = vmul.f32 %v875, %v906
    %v908 = vadd.f32 %v785, %v907
    %v909 = vmax.f32 %v786, %v908
    %s910 = sld [smem:[#allocation2 + $0xe]]
    %s911 = sld [smem:[#allocation2 + $0xf]]
    %913 = vset.pattern.permute.xlu0 0
    %914 = vperm.xlu0 %913, %v905
    %v915 = vpop.permute.xlu0 %914
    %v917 = vmul.f32 %v915, %v52
    %v918 = vrot.slane %v917, 4
    %v919 = vadd.f32 %v917, %v918
    %v920 = vrot.slane %v919, 2
    %v921 = vadd.f32 %v919, %v920
    %v922 = vrot.slane %v921, 1
    %v923 = vadd.f32 %v921, %v922
    %v924 = vadd.f32 %v53, %v923
    %v925 = vxor.u32 %v924, 2147483648
    %v926 = vmul.f32 %v925, 1.442695
    %v927 = vpow.pop %v926
    %v928 = vadd.f32 %v927, 1.0
    %v929 = vrcp.pop %v928
    %v930 = vmul.f32 %v928, %v929
    %v931 = vsub.f32 1.0, %v930
    %v932 = vmul.f32 %v929, %v931
    %v933 = vadd.f32 %v929, %v932
    %vm934 = vweird.f32 %v928
    %vm935 = vweird.f32 %v929
    %vm936 = vmor %vm934, %vm935
    %v937 = vsel %vm936, %v929, %v933
    %v938 = vand.u32 2147483647, %v928
    %vm939 = vcmp.eq.f32.partialorder %v938, 8.507059e+37
    %v940 = vand.u32 %v928, 2147483648
    %v941 = vor.u32 1.1754944e-38, %v940
    %v942 = vsel %vm939, %v941, %v937
    %v943 = vmul.f32 1.0, %v942
    %v944 = vtanh.pop %v924
    %945 = vrot.lane.b32.xlu0 %v944, 64
    %v946 = vpop.permute.xlu0 %945
    %v947 = vmul.f32 %v943, %v946
    %948 = vrot.lane.b32.xlu0 %v943, 32
    %v949 = vpop.permute.xlu0 %948
    %v950 = vtanh.pop %v947
    %v951 = vmul.f32 %v949, %v950
    %v952 = vperm.slane %v951, 0
    %v953 = vmul.f32 %v952, %v54
    %954 = vadd.xlane.f32.xlu0 %v953
    %v955 = vpop.xlane.xlu0 %954
    %v956 = vadd.f32 %v955, %v55
    %v957 = vtanh.pop %v956
    %v958 = vmul.f32 %v957, %v44
    %v959 = vmul.f32 %v958, 1.442695
    %v960 = vpow.pop %v959
    %v961 = vsel %vm47, %v957, %v960
    %v962 = vsel %vm42, %v961, 0.0
    %v963 = vsel %vm112, %v962, 0.0
    %v964 = vrot.slane %v963, 4
    %v965 = vadd.f32 %v963, %v964
    %v966 = vrot.slane %v965, 2
    %v967 = vadd.f32 %v965, %v966
    %v968 = vrot.slane %v967, 1
    %v969 = vadd.f32 %v967, %v968
    %v970 = vrcp.pop %v969
    %v971 = vrot.slane %v961, 1
    %v972 = vrot.slane %v961, 2
    %v973 = vstv %s910
    %v974 = vmul.f32 %v971, %v973
    %v975 = vadd.f32 %v961, %v974
    %v976 = vsel %vm45, %v975, 0.0
    %v977 = vstv %s911
    %v978 = vmul.f32 %v972, %v977
    %v979 = vadd.f32 %v971, %v978
    %v980 = vsel %vm37, %v979, 0.0
    %v981 = vadd.f32 %v976, %v980
    %v982 = vmul.f32 %v972, %v970
    %v983 = vsel %vm50, %v982, 0.0
    %v984 = vadd.f32 %v981, %v983
    %v985 = vsub.f32 1.0, %v909
    %vm986 = vcmp.gt.f32.partialorder %v985, 0.0
    %vm987 = vcmp.gt.f32.partialorder %v902, 0.5
    %v988 = vsel %vm986, 1, 0
    %989 = vset.pattern.permute.xlu0 0
    %990 = vperm.xlu0 %989, %v988
    %v991 = vpop.permute.xlu0 %990
    %vm992 = vcmp.eq.s32.totalorder %v991, 1
    %vm993 = vmand %vm992, %vm987
    %v994 = vsel %vm993, 1, 0
    %v995 = vperm.slane %v994, 0
    %vm996 = vcmp.eq.s32.totalorder %v995, 1
    %998 = vset.pattern.permute.xlu0 0
    %999 = vperm.xlu0 %998, %v984
    %v1000 = vpop.permute.xlu0 %999
    %v1002 = vsel %vm996, %v1000, %v892
    %1003 = vst [vmem:[%s5] sm:$0xff] %v1002
    // Predicated region
    $region26: #{sketch_decoder_forward.1} parent=1 // pred_check
      _
    $region27: #{sketch_decoder_forward.1} parent=1 // pred_check_branch
      %1005 = sbr.rel (0) target = $region29
    $region28: #{sketch_decoder_forward.1} parent=1 // pred_region
      _
    $region29: #{sketch_decoder_forward.1} parent=1 // pred_fallthru
      _
    // Predicated region
    $region30: #{sketch_decoder_forward.1} parent=1 // pred_check
      _
    $region31: #{sketch_decoder_forward.1} parent=1 // pred_check_branch
      %1007 = sbr.rel (0) target = $region33
    $region32: #{sketch_decoder_forward.1} parent=1 // pred_region
      _
    $region33: #{sketch_decoder_forward.1} parent=1 // pred_fallthru
      _
    %1008 = vsyncpa [#allocation3], 1

</llo_original>
